<compile_context>
chip_gen: v7x
topology: tpu7x:2x2x1
jax: 0.10.0
libtpu: 0.0.40
codegen_flags: <defaults>
</compile_context>

<pallas_src>
import jax
import jax.numpy as jnp
from jax.experimental import pallas as pl
from jax.experimental.pallas import tpu as pltpu

W1 = 512                       # hidden width (module-level `w1` in the PyTorch file)
DEFAULT_TM = 1024              # max batch rows per grid step
LANE = 128
_VMEM_LIMIT_BYTES = 32 * 1024 * 1024   # safe on v5e/v6e/v7x; needed for v5e at big TM


def _round_up(n, m):
    return ((n + m - 1) // m) * m


def _tensorcores_per_chip():
    """Heuristic megacore detection: v4 / v5p / v7x have 2 TensorCores/chip."""
    try:
        kind = jax.devices()[0].device_kind.lower()
    except Exception:
        return 1
    if any(tag in kind for tag in ("v4", "v5p", "v7")):
        return 2
    return 1


def _ae_kernel(x_ref, noise_ref,
               w0, b0, w1, b1, w2, b2, w3, b3, w4, b4, w5, b5,
               yhat_ref, l_ref):
    """Fused 6-layer autoencoder forward for one batch tile.

    x_ref     : [TM, in_pad]   bf16
    noise_ref : [TM, bot_pad]  f32   (sqrt(noise_var) * N(0,1); zero in padding)
    w_i       : [in_i, out_i]  bf16  (already transposed & zero-padded)
    b_i       : [1, out_i]     f32
    yhat_ref  : [TM, out_pad]  f32
    l_ref     : [TM, bot_pad]  f32
    """
    f32 = jnp.float32
    bf16 = jnp.bfloat16

    def dense(h, w_ref, b_ref):
        # bf16 into the MXU, f32 accumulation, f32 bias add on the VPU.
        # (astype is a no-op when h is already bf16, e.g. the first layer.)
        return jnp.dot(h.astype(bf16), w_ref[...],
                       preferred_element_type=f32) + b_ref[...]

    h = x_ref[...]                                       # bf16
    h = jnp.maximum(dense(h, w0, b0), 0.0)               # encoder Linear + ReLU
    h = jnp.maximum(dense(h, w1, b1), 0.0)               # encoder Linear + ReLU
    l = jnp.tanh(dense(h, w2, b2)) + noise_ref[...]      # bottleneck Tanh + noise
    l_ref[...] = l.astype(l_ref.dtype)

    h = jnp.maximum(dense(l, w3, b3), 0.0)               # decoder Linear + ReLU
    h = jnp.maximum(dense(h, w4, b4), 0.0)               # decoder Linear + ReLU
    yhat_ref[...] = dense(h, w5, b5).astype(yhat_ref.dtype)   # final Linear


def prepare_params(params):
    """Zero-pad every weight/bias to 128-lane multiples; cast weights to bf16.

    params: list of (W_t [in, out] f32, b [1, out] f32) in layer order.
    """
    prepped = []
    for w_t, b in params:
        fi, fo = w_t.shape
        fi_p, fo_p = _round_up(fi, LANE), _round_up(fo, LANE)
        w_p = jnp.zeros((fi_p, fo_p), jnp.bfloat16).at[:fi, :fo].set(
            w_t.astype(jnp.bfloat16))
        b_p = jnp.zeros((1, fo_p), jnp.float32).at[:, :fo].set(b)
        prepped.append((w_p, b_p))
    return prepped


def neural_network1_forward(x, params, noise, *, tm=DEFAULT_TM):
    """x: [B, input_dim] f32, noise: [B, bottle_dim] f32 (pre-scaled).

    Returns (y_hat [B, output_dim], l [B, bottle_dim]).
    """
    B, in_dim = x.shape
    bottle_dim = params[2][0].shape[1]
    out_dim = params[-1][0].shape[1]

    prepped = prepare_params(params)
    flat = [a for pair in prepped for a in pair]

    in_pad = prepped[0][0].shape[0]
    bot_pad = prepped[2][0].shape[1]
    out_pad = prepped[-1][0].shape[1]

    # Balanced batch tiling:
    #  - at most `tm` rows per tile (amortizes fixed per-grid-step overhead),
    #  - tiles sized round_up(cdiv(B, n_tiles), 8) so padding rows are minimal,
    #  - >= 2 tiles on megacore chips (v4/v5p/v7x) so "parallel" uses both TCs.
    n_tiles = max(pl.cdiv(B, tm), 1)
    if _tensorcores_per_chip() >= 2 and B >= 16:
        n_tiles = max(n_tiles, 2)
    tm_eff = _round_up(pl.cdiv(B, n_tiles), 8)
    n_tiles = pl.cdiv(B, tm_eff)
    b_pad = n_tiles * tm_eff

    # Single fused pad+cast per input. x goes straight to bf16 (kernel feeds it
    # to the MXU as bf16 anyway) -> half the input HBM bytes, identical numerics.
    x_p = jnp.zeros((b_pad, in_pad), jnp.bfloat16).at[:B, :in_dim].set(
        x.astype(jnp.bfloat16))
    n_p = jnp.zeros((b_pad, bot_pad), jnp.float32).at[:B, :bottle_dim].set(noise)

    def act_spec(cols):
        return pl.BlockSpec((tm_eff, cols), lambda i: (i, 0))

    in_specs = [act_spec(in_pad), act_spec(bot_pad)]
    # Weights/biases: full-array blocks with a constant index_map -> VMEM-resident.
    in_specs += [pl.BlockSpec(p.shape, lambda i: (0, 0)) for p in flat]

    y_hat, l = pl.pallas_call(
        _ae_kernel,
        out_shape=(jax.ShapeDtypeStruct((b_pad, out_pad), jnp.float32),
                   jax.ShapeDtypeStruct((b_pad, bot_pad), jnp.float32)),
        grid=(n_tiles,),
        in_specs=in_specs,
        out_specs=(act_spec(out_pad), act_spec(bot_pad)),
        compiler_params=pltpu.CompilerParams(
            dimension_semantics=("parallel",),
            vmem_limit_bytes=_VMEM_LIMIT_BYTES),
    )(x_p, n_p, *flat)

    return y_hat[:B, :out_dim], l[:B, :bottle_dim]


def init_params(key, input_dim, output_dim, bottle_dim):
    """nn.Linear-style U(-1/sqrt(fan_in), 1/sqrt(fan_in)) init.

    Weights are returned already transposed to [in_features, out_features].
    """
    dims = [(input_dim, W1), (W1, W1), (W1, bottle_dim),
            (bottle_dim, W1), (W1, W1), (W1, output_dim)]
    params = []
    for fan_in, fan_out in dims:
        key, kw, kb = jax.random.split(key, 3)
        bound = 1.0 / (fan_in ** 0.5)
        w_t = jax.random.uniform(kw, (fan_in, fan_out), jnp.float32, -bound, bound)
        b = jax.random.uniform(kb, (1, fan_out), jnp.float32, -bound, bound)
        params.append((w_t, b))
    return params


def reference_forward(x, params, noise):
    """Pure-JAX reference with identical numerics (bf16-in / f32-accumulate)."""
    bf16 = jnp.bfloat16

    def dense(h, w, b):
        return jnp.dot(h.astype(bf16), w.astype(bf16),
                       preferred_element_type=jnp.float32) + b

    h = jnp.maximum(dense(x, *params[0]), 0.0)
    h = jnp.maximum(dense(h, *params[1]), 0.0)
    l = jnp.tanh(dense(h, *params[2])) + noise
    h = jnp.maximum(dense(l, *params[3]), 0.0)
    h = jnp.maximum(dense(h, *params[4]), 0.0)
    y_hat = dense(h, *params[5])
    return y_hat, l


if __name__ == "__main__":
    input_dim, output_dim, bottle_dim = 32, 32, 8
    noise_var = 0.01

    key = jax.random.PRNGKey(0)
    key, kx, kn = jax.random.split(key, 3)
    params = init_params(key, input_dim, output_dim, bottle_dim)

    # batch=2: small demo case (single 8-row tile); batch=300: exercises the
    # balanced tiling (one 304-row tile, or 2x152 on megacore chips) and the
    # "parallel" batch grid.
    for batch in (2, 300):
        kx_b = jax.random.fold_in(kx, batch)
        kn_b = jax.random.fold_in(kn, batch)
        x = jax.random.normal(kx_b, (batch, input_dim), jnp.float32)
        noise = (noise_var ** 0.5) * jax.random.normal(
            kn_b, (batch, bottle_dim), jnp.float32)

        y_hat, l = neural_network1_forward(x, params, noise)
        y_hat = jax.block_until_ready(y_hat)
        l = jax.block_until_ready(l)

        y_ref, l_ref = reference_forward(x, params, noise)
        assert y_hat.shape == (batch, output_dim)
        assert l.shape == (batch, bottle_dim)
        assert jnp.allclose(y_hat, y_ref, atol=1e-2, rtol=1e-2)
        assert jnp.allclose(l, l_ref, atol=1e-2, rtol=1e-2)

    print("KERNEL_OK")
</pallas_src>

<mosaic_0001>
module attributes {stable_mosaic.version = 11 : i64} {
  func.func @_ae_kernel(%arg0: i32, %arg1: memref<8x128xbf16, #tpu.memory_space<vmem>>, %arg2: memref<8x128xf32, #tpu.memory_space<vmem>>, %arg3: memref<128x512xbf16, #tpu.memory_space<vmem>>, %arg4: memref<1x512xf32, #tpu.memory_space<vmem>>, %arg5: memref<512x512xbf16, #tpu.memory_space<vmem>>, %arg6: memref<1x512xf32, #tpu.memory_space<vmem>>, %arg7: memref<512x128xbf16, #tpu.memory_space<vmem>>, %arg8: memref<1x128xf32, #tpu.memory_space<vmem>>, %arg9: memref<128x512xbf16, #tpu.memory_space<vmem>>, %arg10: memref<1x512xf32, #tpu.memory_space<vmem>>, %arg11: memref<512x512xbf16, #tpu.memory_space<vmem>>, %arg12: memref<1x512xf32, #tpu.memory_space<vmem>>, %arg13: memref<512x128xbf16, #tpu.memory_space<vmem>>, %arg14: memref<1x128xf32, #tpu.memory_space<vmem>>, %arg15: memref<8x128xf32, #tpu.memory_space<vmem>>, %arg16: memref<8x128xf32, #tpu.memory_space<vmem>>) attributes {dimension_semantics = [#tpu.dimension_semantics<parallel>], iteration_bounds = array<i64: 1>, scalar_prefetch = 0 : i64, scratch_operands = 0 : i64, tpu.core_type = #tpu.core_type<tc>, window_params = [{transform_indices = @transform_0, window_bounds = array<i64: 8, 128>}, {transform_indices = @transform_1, window_bounds = array<i64: 8, 128>}, {pipeline_mode = #tpu.pipeline_mode<synchronous>, transform_indices = @transform_2, window_bounds = array<i64: 128, 512>}, {pipeline_mode = #tpu.pipeline_mode<synchronous>, transform_indices = @transform_3, window_bounds = array<i64: 1, 512>}, {pipeline_mode = #tpu.pipeline_mode<synchronous>, transform_indices = @transform_4, window_bounds = array<i64: 512, 512>}, {pipeline_mode = #tpu.pipeline_mode<synchronous>, transform_indices = @transform_5, window_bounds = array<i64: 1, 512>}, {pipeline_mode = #tpu.pipeline_mode<synchronous>, transform_indices = @transform_6, window_bounds = array<i64: 512, 128>}, {pipeline_mode = #tpu.pipeline_mode<synchronous>, transform_indices = @transform_7, window_bounds = array<i64: 1, 128>}, {pipeline_mode = #tpu.pipeline_mode<synchronous>, transform_indices = @transform_8, window_bounds = array<i64: 128, 512>}, {pipeline_mode = #tpu.pipeline_mode<synchronous>, transform_indices = @transform_9, window_bounds = array<i64: 1, 512>}, {pipeline_mode = #tpu.pipeline_mode<synchronous>, transform_indices = @transform_10, window_bounds = array<i64: 512, 512>}, {pipeline_mode = #tpu.pipeline_mode<synchronous>, transform_indices = @transform_11, window_bounds = array<i64: 1, 512>}, {pipeline_mode = #tpu.pipeline_mode<synchronous>, transform_indices = @transform_12, window_bounds = array<i64: 512, 128>}, {pipeline_mode = #tpu.pipeline_mode<synchronous>, transform_indices = @transform_13, window_bounds = array<i64: 1, 128>}, {transform_indices = @transform_14, window_bounds = array<i64: 8, 128>}, {transform_indices = @transform_15, window_bounds = array<i64: 8, 128>}]} {
    %c0 = arith.constant 0 : index
    %c0_0 = arith.constant 0 : index
    %0 = vector.load %arg1[%c0, %c0_0] : memref<8x128xbf16, #tpu.memory_space<vmem>>, vector<8x128xbf16>
    %c0_1 = arith.constant 0 : index
    %c0_2 = arith.constant 0 : index
    %1 = vector.load %arg3[%c0_1, %c0_2] : memref<128x512xbf16, #tpu.memory_space<vmem>>, vector<128x512xbf16>
    %cst = arith.constant dense<0.000000e+00> : vector<8x512xf32>
    %2 = tpu.matmul %0, %1, %cst {dimension_numbers = #tpu.dot_dimension_numbers<[1], [0], [0], [1], [0, 0, 1, 1], [], []>} : vector<8x128xbf16>, vector<128x512xbf16>, vector<8x512xf32> -> vector<8x512xf32>
    %c0_3 = arith.constant 0 : index
    %c0_4 = arith.constant 0 : index
    %3 = vector.load %arg4[%c0_3, %c0_4] : memref<1x512xf32, #tpu.memory_space<vmem>>, vector<1x512xf32>
    %4 = vector.broadcast %3 : vector<1x512xf32> to vector<8x512xf32>
    %5 = arith.addf %2, %4 : vector<8x512xf32>
    %cst_5 = arith.constant 0.000000e+00 : f32
    %6 = vector.broadcast %cst_5 : f32 to vector<8x512xf32>
    %7 = arith.maximumf %5, %6 : vector<8x512xf32>
    %8 = arith.truncf %7 : vector<8x512xf32> to vector<8x512xbf16>
    %c0_6 = arith.constant 0 : index
    %c0_7 = arith.constant 0 : index
    %9 = vector.load %arg5[%c0_6, %c0_7] : memref<512x512xbf16, #tpu.memory_space<vmem>>, vector<512x512xbf16>
    %cst_8 = arith.constant dense<0.000000e+00> : vector<8x512xf32>
    %10 = tpu.matmul %8, %9, %cst_8 {dimension_numbers = #tpu.dot_dimension_numbers<[1], [0], [0], [1], [0, 0, 1, 1], [], []>} : vector<8x512xbf16>, vector<512x512xbf16>, vector<8x512xf32> -> vector<8x512xf32>
    %c0_9 = arith.constant 0 : index
    %c0_10 = arith.constant 0 : index
    %11 = vector.load %arg6[%c0_9, %c0_10] : memref<1x512xf32, #tpu.memory_space<vmem>>, vector<1x512xf32>
    %12 = vector.broadcast %11 : vector<1x512xf32> to vector<8x512xf32>
    %13 = arith.addf %10, %12 : vector<8x512xf32>
    %cst_11 = arith.constant 0.000000e+00 : f32
    %14 = vector.broadcast %cst_11 : f32 to vector<8x512xf32>
    %15 = arith.maximumf %13, %14 : vector<8x512xf32>
    %16 = arith.truncf %15 : vector<8x512xf32> to vector<8x512xbf16>
    %c0_12 = arith.constant 0 : index
    %c0_13 = arith.constant 0 : index
    %17 = vector.load %arg7[%c0_12, %c0_13] : memref<512x128xbf16, #tpu.memory_space<vmem>>, vector<512x128xbf16>
    %cst_14 = arith.constant dense<0.000000e+00> : vector<8x128xf32>
    %18 = tpu.matmul %16, %17, %cst_14 {dimension_numbers = #tpu.dot_dimension_numbers<[1], [0], [0], [1], [0, 0, 1, 1], [], []>} : vector<8x512xbf16>, vector<512x128xbf16>, vector<8x128xf32> -> vector<8x128xf32>
    %c0_15 = arith.constant 0 : index
    %c0_16 = arith.constant 0 : index
    %19 = vector.load %arg8[%c0_15, %c0_16] : memref<1x128xf32, #tpu.memory_space<vmem>>, vector<1x128xf32>
    %20 = vector.broadcast %19 : vector<1x128xf32> to vector<8x128xf32>
    %21 = arith.addf %18, %20 : vector<8x128xf32>
    %22 = math.tanh %21 : vector<8x128xf32>
    %c0_17 = arith.constant 0 : index
    %c0_18 = arith.constant 0 : index
    %23 = vector.load %arg2[%c0_17, %c0_18] : memref<8x128xf32, #tpu.memory_space<vmem>>, vector<8x128xf32>
    %24 = arith.addf %22, %23 : vector<8x128xf32>
    %c0_19 = arith.constant 0 : index
    %c0_20 = arith.constant 0 : index
    %25 = vector.load %arg16[%c0_19, %c0_20] : memref<8x128xf32, #tpu.memory_space<vmem>>, vector<8x128xf32>
    tpu.vector_store %arg16[%c0_19, %c0_20], %24 {strides = array<i32>} : memref<8x128xf32, #tpu.memory_space<vmem>>, vector<8x128xf32>,
    %26 = arith.truncf %24 : vector<8x128xf32> to vector<8x128xbf16>
    %c0_21 = arith.constant 0 : index
    %c0_22 = arith.constant 0 : index
    %27 = vector.load %arg9[%c0_21, %c0_22] : memref<128x512xbf16, #tpu.memory_space<vmem>>, vector<128x512xbf16>
    %cst_23 = arith.constant dense<0.000000e+00> : vector<8x512xf32>
    %28 = tpu.matmul %26, %27, %cst_23 {dimension_numbers = #tpu.dot_dimension_numbers<[1], [0], [0], [1], [0, 0, 1, 1], [], []>} : vector<8x128xbf16>, vector<128x512xbf16>, vector<8x512xf32> -> vector<8x512xf32>
    %c0_24 = arith.constant 0 : index
    %c0_25 = arith.constant 0 : index
    %29 = vector.load %arg10[%c0_24, %c0_25] : memref<1x512xf32, #tpu.memory_space<vmem>>, vector<1x512xf32>
    %30 = vector.broadcast %29 : vector<1x512xf32> to vector<8x512xf32>
    %31 = arith.addf %28, %30 : vector<8x512xf32>
    %cst_26 = arith.constant 0.000000e+00 : f32
    %32 = vector.broadcast %cst_26 : f32 to vector<8x512xf32>
    %33 = arith.maximumf %31, %32 : vector<8x512xf32>
    %34 = arith.truncf %33 : vector<8x512xf32> to vector<8x512xbf16>
    %c0_27 = arith.constant 0 : index
    %c0_28 = arith.constant 0 : index
    %35 = vector.load %arg11[%c0_27, %c0_28] : memref<512x512xbf16, #tpu.memory_space<vmem>>, vector<512x512xbf16>
    %cst_29 = arith.constant dense<0.000000e+00> : vector<8x512xf32>
    %36 = tpu.matmul %34, %35, %cst_29 {dimension_numbers = #tpu.dot_dimension_numbers<[1], [0], [0], [1], [0, 0, 1, 1], [], []>} : vector<8x512xbf16>, vector<512x512xbf16>, vector<8x512xf32> -> vector<8x512xf32>
    %c0_30 = arith.constant 0 : index
    %c0_31 = arith.constant 0 : index
    %37 = vector.load %arg12[%c0_30, %c0_31] : memref<1x512xf32, #tpu.memory_space<vmem>>, vector<1x512xf32>
    %38 = vector.broadcast %37 : vector<1x512xf32> to vector<8x512xf32>
    %39 = arith.addf %36, %38 : vector<8x512xf32>
    %cst_32 = arith.constant 0.000000e+00 : f32
    %40 = vector.broadcast %cst_32 : f32 to vector<8x512xf32>
    %41 = arith.maximumf %39, %40 : vector<8x512xf32>
    %42 = arith.truncf %41 : vector<8x512xf32> to vector<8x512xbf16>
    %c0_33 = arith.constant 0 : index
    %c0_34 = arith.constant 0 : index
    %43 = vector.load %arg13[%c0_33, %c0_34] : memref<512x128xbf16, #tpu.memory_space<vmem>>, vector<512x128xbf16>
    %cst_35 = arith.constant dense<0.000000e+00> : vector<8x128xf32>
    %44 = tpu.matmul %42, %43, %cst_35 {dimension_numbers = #tpu.dot_dimension_numbers<[1], [0], [0], [1], [0, 0, 1, 1], [], []>} : vector<8x512xbf16>, vector<512x128xbf16>, vector<8x128xf32> -> vector<8x128xf32>
    %c0_36 = arith.constant 0 : index
    %c0_37 = arith.constant 0 : index
    %45 = vector.load %arg14[%c0_36, %c0_37] : memref<1x128xf32, #tpu.memory_space<vmem>>, vector<1x128xf32>
    %46 = vector.broadcast %45 : vector<1x128xf32> to vector<8x128xf32>
    %47 = arith.addf %44, %46 : vector<8x128xf32>
    %c0_38 = arith.constant 0 : index
    %c0_39 = arith.constant 0 : index
    %48 = vector.load %arg15[%c0_38, %c0_39] : memref<8x128xf32, #tpu.memory_space<vmem>>, vector<8x128xf32>
    tpu.vector_store %arg15[%c0_38, %c0_39], %47 {strides = array<i32>} : memref<8x128xf32, #tpu.memory_space<vmem>>, vector<8x128xf32>,
    return
  }
  func.func @transform_0(%arg0: i32) -> (i32, i32) {
    %c0_i32 = arith.constant 0 : i32
    %c0_i32_0 = arith.constant 0 : i32
    return %arg0, %c0_i32 : i32, i32
  }
  func.func @transform_1(%arg0: i32) -> (i32, i32) {
    %c0_i32 = arith.constant 0 : i32
    %c0_i32_0 = arith.constant 0 : i32
    return %arg0, %c0_i32 : i32, i32
  }
  func.func @transform_2(%arg0: i32) -> (i32, i32) {
    %c0_i32 = arith.constant 0 : i32
    %c0_i32_0 = arith.constant 0 : i32
    %c0_i32_1 = arith.constant 0 : i32
    return %c0_i32, %c0_i32_0 : i32, i32
  }
  func.func @transform_3(%arg0: i32) -> (i32, i32) {
    %c0_i32 = arith.constant 0 : i32
    %c0_i32_0 = arith.constant 0 : i32
    %c0_i32_1 = arith.constant 0 : i32
    return %c0_i32, %c0_i32_0 : i32, i32
  }
  func.func @transform_4(%arg0: i32) -> (i32, i32) {
    %c0_i32 = arith.constant 0 : i32
    %c0_i32_0 = arith.constant 0 : i32
    %c0_i32_1 = arith.constant 0 : i32
    return %c0_i32, %c0_i32_0 : i32, i32
  }
  func.func @transform_5(%arg0: i32) -> (i32, i32) {
    %c0_i32 = arith.constant 0 : i32
    %c0_i32_0 = arith.constant 0 : i32
    %c0_i32_1 = arith.constant 0 : i32
    return %c0_i32, %c0_i32_0 : i32, i32
  }
  func.func @transform_6(%arg0: i32) -> (i32, i32) {
    %c0_i32 = arith.constant 0 : i32
    %c0_i32_0 = arith.constant 0 : i32
    %c0_i32_1 = arith.constant 0 : i32
    return %c0_i32, %c0_i32_0 : i32, i32
  }
  func.func @transform_7(%arg0: i32) -> (i32, i32) {
    %c0_i32 = arith.constant 0 : i32
    %c0_i32_0 = arith.constant 0 : i32
    %c0_i32_1 = arith.constant 0 : i32
    return %c0_i32, %c0_i32_0 : i32, i32
  }
  func.func @transform_8(%arg0: i32) -> (i32, i32) {
    %c0_i32 = arith.constant 0 : i32
    %c0_i32_0 = arith.constant 0 : i32
    %c0_i32_1 = arith.constant 0 : i32
    return %c0_i32, %c0_i32_0 : i32, i32
  }
  func.func @transform_9(%arg0: i32) -> (i32, i32) {
    %c0_i32 = arith.constant 0 : i32
    %c0_i32_0 = arith.constant 0 : i32
    %c0_i32_1 = arith.constant 0 : i32
    return %c0_i32, %c0_i32_0 : i32, i32
  }
  func.func @transform_10(%arg0: i32) -> (i32, i32) {
    %c0_i32 = arith.constant 0 : i32
    %c0_i32_0 = arith.constant 0 : i32
    %c0_i32_1 = arith.constant 0 : i32
    return %c0_i32, %c0_i32_0 : i32, i32
  }
  func.func @transform_11(%arg0: i32) -> (i32, i32) {
    %c0_i32 = arith.constant 0 : i32
    %c0_i32_0 = arith.constant 0 : i32
    %c0_i32_1 = arith.constant 0 : i32
    return %c0_i32, %c0_i32_0 : i32, i32
  }
  func.func @transform_12(%arg0: i32) -> (i32, i32) {
    %c0_i32 = arith.constant 0 : i32
    %c0_i32_0 = arith.constant 0 : i32
    %c0_i32_1 = arith.constant 0 : i32
    return %c0_i32, %c0_i32_0 : i32, i32
  }
  func.func @transform_13(%arg0: i32) -> (i32, i32) {
    %c0_i32 = arith.constant 0 : i32
    %c0_i32_0 = arith.constant 0 : i32
    %c0_i32_1 = arith.constant 0 : i32
    return %c0_i32, %c0_i32_0 : i32, i32
  }
  func.func @transform_14(%arg0: i32) -> (i32, i32) {
    %c0_i32 = arith.constant 0 : i32
    %c0_i32_0 = arith.constant 0 : i32
    return %arg0, %c0_i32 : i32, i32
  }
  func.func @transform_15(%arg0: i32) -> (i32, i32) {
    %c0_i32 = arith.constant 0 : i32
    %c0_i32_0 = arith.constant 0 : i32
    return %arg0, %c0_i32 : i32, i32
  }
}

</mosaic_0001>

<llo_original>
// kernel: tpu_custom_call.1
$region0: #{tpu_custom_call.1}
  #allocation0 [shape = 'u32[]', space=smem, size = 0x4, offset = 0x4, fixed_abs, tag = 'smem constant byte address 0x4 - core index']
  #allocation1 [shape = 'u32[144,128]{1,0:T(1,128)}', space=vmem, size = 0x12000, scoped, tag = 'internal scratch']
  %s0 = inlined_call_operand.hbm [shape: bf16[8,128], index: 0, kind: input, shape index: {}]
  %s1 = inlined_call_operand.hbm [shape: f32[8,128], index: 1, kind: input, shape index: {}]
  %s2 = inlined_call_operand.hbm [shape: bf16[128,512], index: 2, kind: input, shape index: {}]
  %s3 = inlined_call_operand.vmem [shape: f32[1,512], index: 3, kind: input, shape index: {}]
  %s4 = inlined_call_operand.hbm [shape: bf16[512,512], index: 4, kind: input, shape index: {}]
  %s5 = inlined_call_operand.vmem [shape: f32[1,512], index: 5, kind: input, shape index: {}]
  %s6 = inlined_call_operand.hbm [shape: bf16[512,128], index: 6, kind: input, shape index: {}]
  %s7 = inlined_call_operand.vmem [shape: f32[1,128], index: 7, kind: input, shape index: {}]
  %s8 = inlined_call_operand.hbm [shape: bf16[128,512], index: 8, kind: input, shape index: {}]
  %s9 = inlined_call_operand.vmem [shape: f32[1,512], index: 9, kind: input, shape index: {}]
  %s10 = inlined_call_operand.hbm [shape: bf16[512,512], index: 10, kind: input, shape index: {}]
  %s11 = inlined_call_operand.vmem [shape: f32[1,512], index: 11, kind: input, shape index: {}]
  %s12 = inlined_call_operand.hbm [shape: bf16[512,128], index: 12, kind: input, shape index: {}]
  %s13 = inlined_call_operand.vmem [shape: f32[1,128], index: 13, kind: input, shape index: {}]
  %s14 = inlined_call_operand.hbm [shape: f32[8,128], index: 14, kind: output, shape index: {0}]
  %s15 = inlined_call_operand.hbm [shape: f32[8,128], index: 15, kind: output, shape index: {1}]
  %16 = xla_tuple %s14, %s15
  %s17 = sld [smem:[#allocation0]]
  $region106: #{tpu_custom_call.1} parent=0
    _
  %s19 = ssub.s32 1, %s17
  %s20 = scalar_select 0, %s19, %s17
  $region1: #{tpu_custom_call.1} parent=0
    #allocation2 [shape = 'u8[2048]{0}', space=vmem, size = 0x800, scoped, tag = 'input window, operand 0, single buffered']
    #allocation3 [shape = 's32[1]{0}', space=sflag, size = 0x4, scoped, tag = 'scoped memory for tpu_custom_call.1']
    #allocation4 [shape = 's32[1]{0}', space=sflag, size = 0x4, scoped, tag = 'scoped memory for tpu_custom_call.1']
    #allocation5 [shape = 'u8[4096]{0}', space=vmem, size = 0x1000, scoped, tag = 'input window, operand 1, single buffered']
    #allocation6 [shape = 's32[1]{0}', space=sflag, size = 0x4, scoped, tag = 'scoped memory for tpu_custom_call.1']
    #allocation7 [shape = 'u8[131072]{0}', space=vmem, size = 0x20000, scoped, tag = 'input window, operand 2, single buffered']
    #allocation8 [shape = 'u8[524288]{0}', space=vmem, size = 0x80000, scoped, tag = 'input window, operand 4, single buffered']
    #allocation9 [shape = 's32[1]{0}', space=sflag, size = 0x4, scoped, tag = 'scoped memory for tpu_custom_call.1']
    #allocation10 [shape = 'u8[131072]{0}', space=vmem, size = 0x20000, scoped, tag = 'input window, operand 6, single buffered']
    #allocation11 [shape = 'u8[131072]{0}', space=vmem, size = 0x20000, scoped, tag = 'input window, operand 8, single buffered']
    #allocation12 [shape = 's32[1]{0}', space=sflag, size = 0x4, scoped, tag = 'scoped memory for tpu_custom_call.1']
    #allocation13 [shape = 'u8[524288]{0}', space=vmem, size = 0x80000, scoped, tag = 'input window, operand 10, single buffered']
    #allocation14 [shape = 'u8[131072]{0}', space=vmem, size = 0x20000, scoped, tag = 'input window, operand 12, single buffered']
    #allocation15 [shape = 's32[1]{0}', space=sflag, size = 0x4, scoped, tag = 'scoped memory for tpu_custom_call.1']
    #allocation16 [shape = 'u8[4096]{0}', space=vmem, size = 0x1000, scoped, tag = 'output window, operand 0, single buffered']
    #allocation17 [shape = 'u8[4096]{0}', space=vmem, size = 0x1000, scoped, tag = 'output window, operand 1, single buffered']
    #allocation18 [shape = 's32[1]{0}', space=sflag, size = 0x4, scoped, tag = 'scoped memory for tpu_custom_call.1']
    %21 = vsyncpa [#allocation3], 0
    %22 = vsyncpa [#allocation6], 0
    %23 = vsyncpa [#allocation9], 0
    %24 = vsyncpa [#allocation12], 0
    %25 = vsyncpa [#allocation15], 0
    %26 = vsyncpa [#allocation4], 0
    %27 = vsyncpa [#allocation18], 0
    // Predicated region
    $region2: #{tpu_custom_call.1} parent=1 // pred_check
      _
    $region3: #{tpu_custom_call.1} parent=1 // pred_check_branch
      %29 = sbr.rel (0) target = $region5
    $region4: #{tpu_custom_call.1} parent=1 // pred_region
      %s31 = ssub.s32 64, 64
      %32 = vsyncadd [#allocation3], %s31
      %s34 = sshll.u32 [#allocation2], 4
      %s35 = int_to_ptr.vmem [resolvable:$true] %s34
      %37 = dma.hbm_to_vmem [thread:$0]  %s0, 64, %s35, [#allocation3]
    $region5: #{tpu_custom_call.1} parent=1 // pred_fallthru
      _
    // Predicated region
    $region6: #{tpu_custom_call.1} parent=1 // pred_check
      _
    $region7: #{tpu_custom_call.1} parent=1 // pred_check_branch
      %39 = sbr.rel (0) target = $region9
    $region8: #{tpu_custom_call.1} parent=1 // pred_region
      %s41 = ssub.s32 128, 128
      %42 = vsyncadd [#allocation6], %s41
      %s44 = sshll.u32 [#allocation5], 4
      %s45 = int_to_ptr.vmem [resolvable:$true] %s44
      %47 = dma.hbm_to_vmem [thread:$0]  %s1, 128, %s45, [#allocation6]
    $region9: #{tpu_custom_call.1} parent=1 // pred_fallthru
      _
    // Predicated region
    $region10: #{tpu_custom_call.1} parent=1 // pred_check
      _
    $region11: #{tpu_custom_call.1} parent=1 // pred_check_branch
      %49 = sbr.rel (0) target = $region13
    $region12: #{tpu_custom_call.1} parent=1 // pred_region
      %s51 = ssub.s32 4096, 4096
      %52 = vsyncadd [#allocation6], %s51
      %s53 = sshll.u32 [#allocation7], 4
      %s54 = int_to_ptr.vmem [resolvable:$true] %s53
      %59 = dma.hbm_to_vmem [thread:$0]  %s2, 4096, %s54, [#allocation6], 256, 256, 16
    $region13: #{tpu_custom_call.1} parent=1 // pred_fallthru
      _
    // Predicated region
    $region14: #{tpu_custom_call.1} parent=1 // pred_check
      _
    $region15: #{tpu_custom_call.1} parent=1 // pred_check_branch
      %61 = sbr.rel (0) target = $region17
    $region16: #{tpu_custom_call.1} parent=1 // pred_region
      _
    $region17: #{tpu_custom_call.1} parent=1 // pred_fallthru
      _
    // Predicated region
    $region18: #{tpu_custom_call.1} parent=1 // pred_check
      _
    $region19: #{tpu_custom_call.1} parent=1 // pred_check_branch
      %63 = sbr.rel (0) target = $region21
    $region20: #{tpu_custom_call.1} parent=1 // pred_region
      %s65 = ssub.s32 16384, 16384
      %66 = vsyncadd [#allocation9], %s65
      %s67 = sshll.u32 [#allocation8], 4
      %s68 = int_to_ptr.vmem [resolvable:$true] %s67
      %73 = dma.hbm_to_vmem [thread:$0]  %s4, 16384, %s68, [#allocation9], 256, 256, 16
    $region21: #{tpu_custom_call.1} parent=1 // pred_fallthru
      _
    // Predicated region
    $region22: #{tpu_custom_call.1} parent=1 // pred_check
      _
    $region23: #{tpu_custom_call.1} parent=1 // pred_check_branch
      %75 = sbr.rel (0) target = $region25
    $region24: #{tpu_custom_call.1} parent=1 // pred_region
      _
    $region25: #{tpu_custom_call.1} parent=1 // pred_fallthru
      _
    // Predicated region
    $region26: #{tpu_custom_call.1} parent=1 // pred_check
      _
    $region27: #{tpu_custom_call.1} parent=1 // pred_check_branch
      %77 = sbr.rel (0) target = $region29
    $region28: #{tpu_custom_call.1} parent=1 // pred_region
      %s79 = ssub.s32 4096, 4096
      %80 = vsyncadd [#allocation9], %s79
      %s81 = sshll.u32 [#allocation10], 4
      %s82 = int_to_ptr.vmem [resolvable:$true] %s81
      %87 = dma.hbm_to_vmem [thread:$0]  %s6, 4096, %s82, [#allocation9], 64, 64, 4
    $region29: #{tpu_custom_call.1} parent=1 // pred_fallthru
      _
    // Predicated region
    $region30: #{tpu_custom_call.1} parent=1 // pred_check
      _
    $region31: #{tpu_custom_call.1} parent=1 // pred_check_branch
      %89 = sbr.rel (0) target = $region33
    $region32: #{tpu_custom_call.1} parent=1 // pred_region
      _
    $region33: #{tpu_custom_call.1} parent=1 // pred_fallthru
      _
    // Predicated region
    $region34: #{tpu_custom_call.1} parent=1 // pred_check
      _
    $region35: #{tpu_custom_call.1} parent=1 // pred_check_branch
      %91 = sbr.rel (0) target = $region37
    $region36: #{tpu_custom_call.1} parent=1 // pred_region
      %s93 = ssub.s32 4096, 4096
      %94 = vsyncadd [#allocation12], %s93
      %s95 = sshll.u32 [#allocation11], 4
      %s96 = int_to_ptr.vmem [resolvable:$true] %s95
      %101 = dma.hbm_to_vmem [thread:$0]  %s8, 4096, %s96, [#allocation12], 256, 256, 16
    $region37: #{tpu_custom_call.1} parent=1 // pred_fallthru
      _
    // Predicated region
    $region38: #{tpu_custom_call.1} parent=1 // pred_check
      _
    $region39: #{tpu_custom_call.1} parent=1 // pred_check_branch
      %103 = sbr.rel (0) target = $region41
    $region40: #{tpu_custom_call.1} parent=1 // pred_region
      _
    $region41: #{tpu_custom_call.1} parent=1 // pred_fallthru
      _
    // Predicated region
    $region42: #{tpu_custom_call.1} parent=1 // pred_check
      _
    $region43: #{tpu_custom_call.1} parent=1 // pred_check_branch
      %105 = sbr.rel (0) target = $region45
    $region44: #{tpu_custom_call.1} parent=1 // pred_region
      %s107 = ssub.s32 16384, 16384
      %108 = vsyncadd [#allocation12], %s107
      %s109 = sshll.u32 [#allocation13], 4
      %s110 = int_to_ptr.vmem [resolvable:$true] %s109
      %115 = dma.hbm_to_vmem [thread:$0]  %s10, 16384, %s110, [#allocation12], 256, 256, 16
    $region45: #{tpu_custom_call.1} parent=1 // pred_fallthru
      _
    // Predicated region
    $region46: #{tpu_custom_call.1} parent=1 // pred_check
      _
    $region47: #{tpu_custom_call.1} parent=1 // pred_check_branch
      %117 = sbr.rel (0) target = $region49
    $region48: #{tpu_custom_call.1} parent=1 // pred_region
      _
    $region49: #{tpu_custom_call.1} parent=1 // pred_fallthru
      _
    // Predicated region
    $region50: #{tpu_custom_call.1} parent=1 // pred_check
      _
    $region51: #{tpu_custom_call.1} parent=1 // pred_check_branch
      %119 = sbr.rel (0) target = $region53
    $region52: #{tpu_custom_call.1} parent=1 // pred_region
      %s121 = ssub.s32 4096, 4096
      %122 = vsyncadd [#allocation15], %s121
      %s123 = sshll.u32 [#allocation14], 4
      %s124 = int_to_ptr.vmem [resolvable:$true] %s123
      %129 = dma.hbm_to_vmem [thread:$0]  %s12, 4096, %s124, [#allocation15], 64, 64, 4
    $region53: #{tpu_custom_call.1} parent=1 // pred_fallthru
      _
    // Predicated region
    $region54: #{tpu_custom_call.1} parent=1 // pred_check
      _
    $region55: #{tpu_custom_call.1} parent=1 // pred_check_branch
      %131 = sbr.rel (0) target = $region57
    $region56: #{tpu_custom_call.1} parent=1 // pred_region
      _
    $region57: #{tpu_custom_call.1} parent=1 // pred_fallthru
      _
    // Predicated region
    $region58: #{tpu_custom_call.1} parent=1 // pred_check
      _
    $region59: #{tpu_custom_call.1} parent=1 // pred_check_branch
      %133 = sbr.rel (0) target = $region61
    $region60: #{tpu_custom_call.1} parent=1 // pred_region
      %134 = dma.done [#allocation3], 64
    $region61: #{tpu_custom_call.1} parent=1 // pred_fallthru
      _
    // Predicated region
    $region62: #{tpu_custom_call.1} parent=1 // pred_check
      _
    $region63: #{tpu_custom_call.1} parent=1 // pred_check_branch
      %136 = sbr.rel (0) target = $region65
    $region64: #{tpu_custom_call.1} parent=1 // pred_region
      %137 = dma.done [#allocation6], 128
    $region65: #{tpu_custom_call.1} parent=1 // pred_fallthru
      _
    // Predicated region
    $region66: #{tpu_custom_call.1} parent=1 // pred_check
      _
    $region67: #{tpu_custom_call.1} parent=1 // pred_check_branch
      %139 = sbr.rel (0) target = $region69
    $region68: #{tpu_custom_call.1} parent=1 // pred_region
      %140 = dma.done [#allocation6], 4096
    $region69: #{tpu_custom_call.1} parent=1 // pred_fallthru
      _
    // Predicated region
    $region70: #{tpu_custom_call.1} parent=1 // pred_check
      _
    $region71: #{tpu_custom_call.1} parent=1 // pred_check_branch
      %142 = sbr.rel (0) target = $region73
    $region72: #{tpu_custom_call.1} parent=1 // pred_region
      %143 = dma.done [#allocation9], 16384
    $region73: #{tpu_custom_call.1} parent=1 // pred_fallthru
      _
    // Predicated region
    $region74: #{tpu_custom_call.1} parent=1 // pred_check
      _
    $region75: #{tpu_custom_call.1} parent=1 // pred_check_branch
      %145 = sbr.rel (0) target = $region77
    $region76: #{tpu_custom_call.1} parent=1 // pred_region
      %146 = dma.done [#allocation9], 4096
    $region77: #{tpu_custom_call.1} parent=1 // pred_fallthru
      _
    // Predicated region
    $region78: #{tpu_custom_call.1} parent=1 // pred_check
      _
    $region79: #{tpu_custom_call.1} parent=1 // pred_check_branch
      %148 = sbr.rel (0) target = $region81
    $region80: #{tpu_custom_call.1} parent=1 // pred_region
      %149 = dma.done [#allocation12], 4096
    $region81: #{tpu_custom_call.1} parent=1 // pred_fallthru
      _
    // Predicated region
    $region82: #{tpu_custom_call.1} parent=1 // pred_check
      _
    $region83: #{tpu_custom_call.1} parent=1 // pred_check_branch
      %151 = sbr.rel (0) target = $region85
    $region84: #{tpu_custom_call.1} parent=1 // pred_region
      %152 = dma.done [#allocation12], 16384
    $region85: #{tpu_custom_call.1} parent=1 // pred_fallthru
      _
    // Predicated region
    $region86: #{tpu_custom_call.1} parent=1 // pred_check
      _
    $region87: #{tpu_custom_call.1} parent=1 // pred_check_branch
      %154 = sbr.rel (0) target = $region89
    $region88: #{tpu_custom_call.1} parent=1 // pred_region
      %155 = dma.done [#allocation15], 4096
    $region89: #{tpu_custom_call.1} parent=1 // pred_fallthru
      _
    %v157 = vld [vmem:[#allocation2] sm:$0xf]
    %v158 = vld [vmem:[#allocation7] sm:$0xff]
    %v159 = vld [vmem:[#allocation7 + $0x8] sm:$0xff]
    %v160 = vld [vmem:[#allocation7 + $0x10] sm:$0xff]
    %v161 = vld [vmem:[#allocation7 + $0x18] sm:$0xff]
    %v162 = vld [vmem:[#allocation7 + $0x20] sm:$0xff]
    %v163 = vld [vmem:[#allocation7 + $0x28] sm:$0xff]
    %v164 = vld [vmem:[#allocation7 + $0x30] sm:$0xff]
    %v165 = vld [vmem:[#allocation7 + $0x38] sm:$0xff]
    %v166 = vld [vmem:[#allocation7 + $0x40] sm:$0xff]
    %v167 = vld [vmem:[#allocation7 + $0x48] sm:$0xff]
    %v168 = vld [vmem:[#allocation7 + $0x50] sm:$0xff]
    %v169 = vld [vmem:[#allocation7 + $0x58] sm:$0xff]
    %v170 = vld [vmem:[#allocation7 + $0x60] sm:$0xff]
    %v171 = vld [vmem:[#allocation7 + $0x68] sm:$0xff]
    %v172 = vld [vmem:[#allocation7 + $0x70] sm:$0xff]
    %v173 = vld [vmem:[#allocation7 + $0x78] sm:$0xff]
    %v174 = vld [vmem:[#allocation7 + $0x80] sm:$0xff]
    %v175 = vld [vmem:[#allocation7 + $0x88] sm:$0xff]
    %v176 = vld [vmem:[#allocation7 + $0x90] sm:$0xff]
    %v177 = vld [vmem:[#allocation7 + $0x98] sm:$0xff]
    %v178 = vld [vmem:[#allocation7 + $0xa0] sm:$0xff]
    %v179 = vld [vmem:[#allocation7 + $0xa8] sm:$0xff]
    %v180 = vld [vmem:[#allocation7 + $0xb0] sm:$0xff]
    %v181 = vld [vmem:[#allocation7 + $0xb8] sm:$0xff]
    %v182 = vld [vmem:[#allocation7 + $0xc0] sm:$0xff]
    %v183 = vld [vmem:[#allocation7 + $0xc8] sm:$0xff]
    %v184 = vld [vmem:[#allocation7 + $0xd0] sm:$0xff]
    %v185 = vld [vmem:[#allocation7 + $0xd8] sm:$0xff]
    %v186 = vld [vmem:[#allocation7 + $0xe0] sm:$0xff]
    %v187 = vld [vmem:[#allocation7 + $0xe8] sm:$0xff]
    %v188 = vld [vmem:[#allocation7 + $0xf0] sm:$0xff]
    %v189 = vld [vmem:[#allocation7 + $0xf8] sm:$0xff]
    %v190 = vld [vmem:[%s3] sm:$0xf]
    %v192 = vlaneseq
    %v193 = vshrl.u32 %v192, 7
    %v194 = vsub.s32 0, %v193
    %v195 = vrot.slane %v190, %v194
    %v196 = vlaneseq
    %v197 = vshrl.u32 %v196, 7
    %v198 = vsub.s32 1, %v197
    %v199 = vrot.slane %v190, %v198
    %v200 = vlaneseq
    %v201 = vshrl.u32 %v200, 7
    %v202 = vsub.s32 2, %v201
    %v203 = vrot.slane %v190, %v202
    %v204 = vlaneseq
    %v205 = vshrl.u32 %v204, 7
    %v206 = vsub.s32 3, %v205
    %v207 = vrot.slane %v190, %v206
    %v244 = vunpack.c.l.b16 %v158
    %v245 = vunpack.c.h.b16 %v158
    %v246 = vunpack.c.l.b16 %v159
    %v247 = vunpack.c.h.b16 %v159
    %v248 = vunpack.c.l.b16 %v160
    %v249 = vunpack.c.h.b16 %v160
    %v250 = vunpack.c.l.b16 %v161
    %v251 = vunpack.c.h.b16 %v161
    %v252 = vunpack.c.l.b16 %v162
    %v253 = vunpack.c.h.b16 %v162
    %v254 = vunpack.c.l.b16 %v163
    %v255 = vunpack.c.h.b16 %v163
    %v256 = vunpack.c.l.b16 %v164
    %v257 = vunpack.c.h.b16 %v164
    %v258 = vunpack.c.l.b16 %v165
    %v259 = vunpack.c.h.b16 %v165
    %v260 = vunpack.c.l.b16 %v166
    %v261 = vunpack.c.h.b16 %v166
    %v262 = vunpack.c.l.b16 %v167
    %v263 = vunpack.c.h.b16 %v167
    %v264 = vunpack.c.l.b16 %v168
    %v265 = vunpack.c.h.b16 %v168
    %v266 = vunpack.c.l.b16 %v169
    %v267 = vunpack.c.h.b16 %v169
    %v268 = vunpack.c.l.b16 %v170
    %v269 = vunpack.c.h.b16 %v170
    %v270 = vunpack.c.l.b16 %v171
    %v271 = vunpack.c.h.b16 %v171
    %v272 = vunpack.c.l.b16 %v172
    %v273 = vunpack.c.h.b16 %v172
    %v274 = vunpack.c.l.b16 %v173
    %v275 = vunpack.c.h.b16 %v173
    %v276 = vunpack.c.l.b16 %v174
    %v277 = vunpack.c.h.b16 %v174
    %v278 = vunpack.c.l.b16 %v175
    %v279 = vunpack.c.h.b16 %v175
    %v280 = vunpack.c.l.b16 %v176
    %v281 = vunpack.c.h.b16 %v176
    %v282 = vunpack.c.l.b16 %v177
    %v283 = vunpack.c.h.b16 %v177
    %v284 = vunpack.c.l.b16 %v178
    %v285 = vunpack.c.h.b16 %v178
    %v286 = vunpack.c.l.b16 %v179
    %v287 = vunpack.c.h.b16 %v179
    %v288 = vunpack.c.l.b16 %v180
    %v289 = vunpack.c.h.b16 %v180
    %v290 = vunpack.c.l.b16 %v181
    %v291 = vunpack.c.h.b16 %v181
    %v292 = vunpack.c.l.b16 %v182
    %v293 = vunpack.c.h.b16 %v182
    %v294 = vunpack.c.l.b16 %v183
    %v295 = vunpack.c.h.b16 %v183
    %v296 = vunpack.c.l.b16 %v184
    %v297 = vunpack.c.h.b16 %v184
    %v298 = vunpack.c.l.b16 %v185
    %v299 = vunpack.c.h.b16 %v185
    %v300 = vunpack.c.l.b16 %v186
    %v301 = vunpack.c.h.b16 %v186
    %v302 = vunpack.c.l.b16 %v187
    %v303 = vunpack.c.h.b16 %v187
    %v304 = vunpack.c.l.b16 %v188
    %v305 = vunpack.c.h.b16 %v188
    %v306 = vunpack.c.l.b16 %v189
    %v307 = vunpack.c.h.b16 %v189
    %v308 = vpack.c.b16 %v248, %v244
    %v309 = vpack.c.b16 %v249, %v245
    %v310 = vpack.c.b16 %v250, %v246
    %v311 = vpack.c.b16 %v251, %v247
    %v312 = vpack.c.b16 %v256, %v252
    %v313 = vpack.c.b16 %v257, %v253
    %v314 = vpack.c.b16 %v258, %v254
    %v315 = vpack.c.b16 %v259, %v255
    %v316 = vpack.c.b16 %v264, %v260
    %v317 = vpack.c.b16 %v265, %v261
    %v318 = vpack.c.b16 %v266, %v262
    %v319 = vpack.c.b16 %v267, %v263
    %v320 = vpack.c.b16 %v272, %v268
    %v321 = vpack.c.b16 %v273, %v269
    %v322 = vpack.c.b16 %v274, %v270
    %v323 = vpack.c.b16 %v275, %v271
    %v324 = vpack.c.b16 %v280, %v276
    %v325 = vpack.c.b16 %v281, %v277
    %v326 = vpack.c.b16 %v282, %v278
    %v327 = vpack.c.b16 %v283, %v279
    %v328 = vpack.c.b16 %v288, %v284
    %v329 = vpack.c.b16 %v289, %v285
    %v330 = vpack.c.b16 %v290, %v286
    %v331 = vpack.c.b16 %v291, %v287
    %v332 = vpack.c.b16 %v296, %v292
    %v333 = vpack.c.b16 %v297, %v293
    %v334 = vpack.c.b16 %v298, %v294
    %v335 = vpack.c.b16 %v299, %v295
    %v336 = vpack.c.b16 %v304, %v300
    %v337 = vpack.c.b16 %v305, %v301
    %v338 = vpack.c.b16 %v306, %v302
    %v339 = vpack.c.b16 %v307, %v303
    %372 = vmatprep.subr.bf16.mxu0 %v309
    %373 = vmatpush1.bf16.msra.mxu0 %v308
    %374 = vmatprep.subr.bf16.mxu0 %v313
    %375 = vmatpush1.bf16.msra.mxu0 %v312
    %376 = vmatprep.subr.bf16.mxu0 %v317
    %377 = vmatpush1.bf16.msra.mxu0 %v316
    %378 = vmatprep.subr.bf16.mxu0 %v321
    %379 = vmatpush1.bf16.msra.mxu0 %v320
    %380 = vmatprep.subr.bf16.mxu0 %v325
    %381 = vmatpush1.bf16.msra.mxu0 %v324
    %382 = vmatprep.subr.bf16.mxu0 %v329
    %383 = vmatpush1.bf16.msra.mxu0 %v328
    %384 = vmatprep.subr.bf16.mxu0 %v333
    %385 = vmatpush1.bf16.msra.mxu0 %v332
    %386 = vmatprep.subr.bf16.mxu0 %v337
    %387 = vmatpush1.bf16.msra.mxu0 %v336
    %388 = vmatprep.subr.bf16.mxu0 0
    %389 = vmatpush1.bf16.msra.mxu0 0
    %390 = vmatprep.subr.bf16.mxu0 0
    %391 = vmatpush1.bf16.msra.mxu0 0
    %392 = vmatprep.subr.bf16.mxu0 0
    %393 = vmatpush1.bf16.msra.mxu0 0
    %394 = vmatprep.subr.bf16.mxu0 0
    %395 = vmatpush1.bf16.msra.mxu0 0
    %396 = vmatprep.subr.bf16.mxu0 0
    %397 = vmatpush1.bf16.msra.mxu0 0
    %398 = vmatprep.subr.bf16.mxu0 0
    %399 = vmatpush1.bf16.msra.mxu0 0
    %400 = vmatprep.subr.bf16.mxu0 0
    %401 = vmatpush1.bf16.msra.mxu0 0
    %402 = vmatprep.subr.bf16.mxu0 0
    %403 = vmatpush1.bf16.msra.mxu0 0
    %404 = vmatprep.mubr.bf16.mxu0 0
    %405 = vmatmul.mubr.bf16.gmra.mrb[0].mxu0 %v157
    %v406 = vpop.f32.mrb[0].mxu0
    %v407 = vadd.f32 %v195, %v406
    %v408 = vpop.f32.mrb[0].mxu0
    %v409 = vadd.f32 %v199, %v408
    %v410 = vpop.f32.mrb[0].mxu0
    %v411 = vpop.f32.mrb[0].mxu0
    %412 = vdwg.mxu0
    %413 = vmatprep.subr.bf16.mxu0 %v311
    %414 = vmatpush1.bf16.msra.mxu0 %v310
    %415 = vmatprep.subr.bf16.mxu0 %v315
    %416 = vmatpush1.bf16.msra.mxu0 %v314
    %417 = vmatprep.subr.bf16.mxu0 %v319
    %418 = vmatpush1.bf16.msra.mxu0 %v318
    %419 = vmatprep.subr.bf16.mxu0 %v323
    %420 = vmatpush1.bf16.msra.mxu0 %v322
    %421 = vmatprep.subr.bf16.mxu0 %v327
    %422 = vmatpush1.bf16.msra.mxu0 %v326
    %423 = vmatprep.subr.bf16.mxu0 %v331
    %424 = vmatpush1.bf16.msra.mxu0 %v330
    %425 = vmatprep.subr.bf16.mxu0 %v335
    %426 = vmatpush1.bf16.msra.mxu0 %v334
    %427 = vmatprep.subr.bf16.mxu0 %v339
    %428 = vmatpush1.bf16.msra.mxu0 %v338
    %429 = vmatprep.subr.bf16.mxu0 0
    %430 = vmatpush1.bf16.msra.mxu0 0
    %431 = vmatprep.subr.bf16.mxu0 0
    %432 = vmatpush1.bf16.msra.mxu0 0
    %433 = vmatprep.subr.bf16.mxu0 0
    %434 = vmatpush1.bf16.msra.mxu0 0
    %435 = vmatprep.subr.bf16.mxu0 0
    %436 = vmatpush1.bf16.msra.mxu0 0
    %437 = vmatprep.subr.bf16.mxu0 0
    %438 = vmatpush1.bf16.msra.mxu0 0
    %439 = vmatprep.subr.bf16.mxu0 0
    %440 = vmatpush1.bf16.msra.mxu0 0
    %441 = vmatprep.subr.bf16.mxu0 0
    %442 = vmatpush1.bf16.msra.mxu0 0
    %443 = vmatprep.subr.bf16.mxu0 0
    %444 = vmatpush1.bf16.msra.mxu0 0
    %445 = vmatprep.mubr.bf16.mxu0 0
    %446 = vmatmul.mubr.bf16.gmra.mrb[0].mxu0 %v157
    %v447 = vpop.f32.mrb[0].mxu0
    %v448 = vadd.f32 %v203, %v447
    %v449 = vpop.f32.mrb[0].mxu0
    %v450 = vadd.f32 %v207, %v449
    %v451 = vpop.f32.mrb[0].mxu0
    %v452 = vpop.f32.mrb[0].mxu0
    %453 = vdwg.mxu0
    %v454 = vmax.f32 %v407, 0.0
    %v455 = vmax.f32 %v409, 0.0
    %v456 = vmax.f32 %v448, 0.0
    %v457 = vmax.f32 %v450, 0.0
    %v458 = vpack.c.bf16 %v454, %v454
    %v459 = vpack.c.bf16 %v455, %v455
    %v460 = vpack.c.bf16 %v456, %v456
    %v461 = vpack.c.bf16 %v457, %v457
    %v462 = vld [vmem:[#allocation8] sm:$0xff]
    %v463 = vld [vmem:[#allocation8 + $0x8] sm:$0xff]
    %v464 = vld [vmem:[#allocation8 + $0x10] sm:$0xff]
    %v465 = vld [vmem:[#allocation8 + $0x18] sm:$0xff]
    %v466 = vld [vmem:[#allocation8 + $0x20] sm:$0xff]
    %v467 = vld [vmem:[#allocation8 + $0x28] sm:$0xff]
    %v468 = vld [vmem:[#allocation8 + $0x30] sm:$0xff]
    %v469 = vld [vmem:[#allocation8 + $0x38] sm:$0xff]
    %v470 = vld [vmem:[#allocation8 + $0x40] sm:$0xff]
    %v471 = vld [vmem:[#allocation8 + $0x48] sm:$0xff]
    %v472 = vld [vmem:[#allocation8 + $0x50] sm:$0xff]
    %v473 = vld [vmem:[#allocation8 + $0x58] sm:$0xff]
    %v474 = vld [vmem:[#allocation8 + $0x60] sm:$0xff]
    %v475 = vld [vmem:[#allocation8 + $0x68] sm:$0xff]
    %v476 = vld [vmem:[#allocation8 + $0x70] sm:$0xff]
    %v477 = vld [vmem:[#allocation8 + $0x78] sm:$0xff]
    %v478 = vld [vmem:[#allocation8 + $0x80] sm:$0xff]
    %v479 = vld [vmem:[#allocation8 + $0x88] sm:$0xff]
    %v480 = vld [vmem:[#allocation8 + $0x90] sm:$0xff]
    %v481 = vld [vmem:[#allocation8 + $0x98] sm:$0xff]
    %v482 = vld [vmem:[#allocation8 + $0xa0] sm:$0xff]
    %v483 = vld [vmem:[#allocation8 + $0xa8] sm:$0xff]
    %v484 = vld [vmem:[#allocation8 + $0xb0] sm:$0xff]
    %v485 = vld [vmem:[#allocation8 + $0xb8] sm:$0xff]
    %v486 = vld [vmem:[#allocation8 + $0xc0] sm:$0xff]
    %v487 = vld [vmem:[#allocation8 + $0xc8] sm:$0xff]
    %v488 = vld [vmem:[#allocation8 + $0xd0] sm:$0xff]
    %v489 = vld [vmem:[#allocation8 + $0xd8] sm:$0xff]
    %v490 = vld [vmem:[#allocation8 + $0xe0] sm:$0xff]
    %v491 = vld [vmem:[#allocation8 + $0xe8] sm:$0xff]
    %v492 = vld [vmem:[#allocation8 + $0xf0] sm:$0xff]
    %v493 = vld [vmem:[#allocation8 + $0xf8] sm:$0xff]
    %v494 = vld [vmem:[#allocation8 + $0x100] sm:$0xff]
    %v495 = vld [vmem:[#allocation8 + $0x108] sm:$0xff]
    %v496 = vld [vmem:[#allocation8 + $0x110] sm:$0xff]
    %v497 = vld [vmem:[#allocation8 + $0x118] sm:$0xff]
    %v498 = vld [vmem:[#allocation8 + $0x120] sm:$0xff]
    %v499 = vld [vmem:[#allocation8 + $0x128] sm:$0xff]
    %v500 = vld [vmem:[#allocation8 + $0x130] sm:$0xff]
    %v501 = vld [vmem:[#allocation8 + $0x138] sm:$0xff]
    %v502 = vld [vmem:[#allocation8 + $0x140] sm:$0xff]
    %v503 = vld [vmem:[#allocation8 + $0x148] sm:$0xff]
    %v504 = vld [vmem:[#allocation8 + $0x150] sm:$0xff]
    %v505 = vld [vmem:[#allocation8 + $0x158] sm:$0xff]
    %v506 = vld [vmem:[#allocation8 + $0x160] sm:$0xff]
    %v507 = vld [vmem:[#allocation8 + $0x168] sm:$0xff]
    %v508 = vld [vmem:[#allocation8 + $0x170] sm:$0xff]
    %v509 = vld [vmem:[#allocation8 + $0x178] sm:$0xff]
    %v510 = vld [vmem:[#allocation8 + $0x180] sm:$0xff]
    %v511 = vld [vmem:[#allocation8 + $0x188] sm:$0xff]
    %v512 = vld [vmem:[#allocation8 + $0x190] sm:$0xff]
    %v513 = vld [vmem:[#allocation8 + $0x198] sm:$0xff]
    %v514 = vld [vmem:[#allocation8 + $0x1a0] sm:$0xff]
    %v515 = vld [vmem:[#allocation8 + $0x1a8] sm:$0xff]
    %v516 = vld [vmem:[#allocation8 + $0x1b0] sm:$0xff]
    %v517 = vld [vmem:[#allocation8 + $0x1b8] sm:$0xff]
    %v518 = vld [vmem:[#allocation8 + $0x1c0] sm:$0xff]
    %v519 = vld [vmem:[#allocation8 + $0x1c8] sm:$0xff]
    %v520 = vld [vmem:[#allocation8 + $0x1d0] sm:$0xff]
    %v521 = vld [vmem:[#allocation8 + $0x1d8] sm:$0xff]
    %v522 = vld [vmem:[#allocation8 + $0x1e0] sm:$0xff]
    %v523 = vld [vmem:[#allocation8 + $0x1e8] sm:$0xff]
    %v524 = vld [vmem:[#allocation8 + $0x1f0] sm:$0xff]
    %v525 = vld [vmem:[#allocation8 + $0x1f8] sm:$0xff]
    %v526 = vld [vmem:[#allocation8 + $0x200] sm:$0xff]
    %v527 = vld [vmem:[#allocation8 + $0x208] sm:$0xff]
    %v528 = vld [vmem:[#allocation8 + $0x210] sm:$0xff]
    %v529 = vld [vmem:[#allocation8 + $0x218] sm:$0xff]
    %v530 = vld [vmem:[#allocation8 + $0x220] sm:$0xff]
    %v531 = vld [vmem:[#allocation8 + $0x228] sm:$0xff]
    %v532 = vld [vmem:[#allocation8 + $0x230] sm:$0xff]
    %v533 = vld [vmem:[#allocation8 + $0x238] sm:$0xff]
    %v534 = vld [vmem:[#allocation8 + $0x240] sm:$0xff]
    %v535 = vld [vmem:[#allocation8 + $0x248] sm:$0xff]
    %v536 = vld [vmem:[#allocation8 + $0x250] sm:$0xff]
    %v537 = vld [vmem:[#allocation8 + $0x258] sm:$0xff]
    %v538 = vld [vmem:[#allocation8 + $0x260] sm:$0xff]
    %v539 = vld [vmem:[#allocation8 + $0x268] sm:$0xff]
    %v540 = vld [vmem:[#allocation8 + $0x270] sm:$0xff]
    %v541 = vld [vmem:[#allocation8 + $0x278] sm:$0xff]
    %v542 = vld [vmem:[#allocation8 + $0x280] sm:$0xff]
    %v543 = vld [vmem:[#allocation8 + $0x288] sm:$0xff]
    %v544 = vld [vmem:[#allocation8 + $0x290] sm:$0xff]
    %v545 = vld [vmem:[#allocation8 + $0x298] sm:$0xff]
    %v546 = vld [vmem:[#allocation8 + $0x2a0] sm:$0xff]
    %v547 = vld [vmem:[#allocation8 + $0x2a8] sm:$0xff]
    %v548 = vld [vmem:[#allocation8 + $0x2b0] sm:$0xff]
    %v549 = vld [vmem:[#allocation8 + $0x2b8] sm:$0xff]
    %v550 = vld [vmem:[#allocation8 + $0x2c0] sm:$0xff]
    %v551 = vld [vmem:[#allocation8 + $0x2c8] sm:$0xff]
    %v552 = vld [vmem:[#allocation8 + $0x2d0] sm:$0xff]
    %v553 = vld [vmem:[#allocation8 + $0x2d8] sm:$0xff]
    %v554 = vld [vmem:[#allocation8 + $0x2e0] sm:$0xff]
    %v555 = vld [vmem:[#allocation8 + $0x2e8] sm:$0xff]
    %v556 = vld [vmem:[#allocation8 + $0x2f0] sm:$0xff]
    %v557 = vld [vmem:[#allocation8 + $0x2f8] sm:$0xff]
    %v558 = vld [vmem:[#allocation8 + $0x300] sm:$0xff]
    %v559 = vld [vmem:[#allocation8 + $0x308] sm:$0xff]
    %v560 = vld [vmem:[#allocation8 + $0x310] sm:$0xff]
    %v561 = vld [vmem:[#allocation8 + $0x318] sm:$0xff]
    %v562 = vld [vmem:[#allocation8 + $0x320] sm:$0xff]
    %v563 = vld [vmem:[#allocation8 + $0x328] sm:$0xff]
    %v564 = vld [vmem:[#allocation8 + $0x330] sm:$0xff]
    %v565 = vld [vmem:[#allocation8 + $0x338] sm:$0xff]
    %v566 = vld [vmem:[#allocation8 + $0x340] sm:$0xff]
    %v567 = vld [vmem:[#allocation8 + $0x348] sm:$0xff]
    %v568 = vld [vmem:[#allocation8 + $0x350] sm:$0xff]
    %v569 = vld [vmem:[#allocation8 + $0x358] sm:$0xff]
    %v570 = vld [vmem:[#allocation8 + $0x360] sm:$0xff]
    %v571 = vld [vmem:[#allocation8 + $0x368] sm:$0xff]
    %v572 = vld [vmem:[#allocation8 + $0x370] sm:$0xff]
    %v573 = vld [vmem:[#allocation8 + $0x378] sm:$0xff]
    %v574 = vld [vmem:[#allocation8 + $0x380] sm:$0xff]
    %v575 = vld [vmem:[#allocation8 + $0x388] sm:$0xff]
    %v576 = vld [vmem:[#allocation8 + $0x390] sm:$0xff]
    %v577 = vld [vmem:[#allocation8 + $0x398] sm:$0xff]
    %v578 = vld [vmem:[#allocation8 + $0x3a0] sm:$0xff]
    %v579 = vld [vmem:[#allocation8 + $0x3a8] sm:$0xff]
    %v580 = vld [vmem:[#allocation8 + $0x3b0] sm:$0xff]
    %v581 = vld [vmem:[#allocation8 + $0x3b8] sm:$0xff]
    %v582 = vld [vmem:[#allocation8 + $0x3c0] sm:$0xff]
    %v583 = vld [vmem:[#allocation8 + $0x3c8] sm:$0xff]
    %v584 = vld [vmem:[#allocation8 + $0x3d0] sm:$0xff]
    %v585 = vld [vmem:[#allocation8 + $0x3d8] sm:$0xff]
    %v586 = vld [vmem:[#allocation8 + $0x3e0] sm:$0xff]
    %v587 = vld [vmem:[#allocation8 + $0x3e8] sm:$0xff]
    %v588 = vld [vmem:[#allocation8 + $0x3f0] sm:$0xff]
    %v589 = vld [vmem:[#allocation8 + $0x3f8] sm:$0xff]
    %v590 = vld [vmem:[%s5] sm:$0xf]
    %v592 = vlaneseq
    %v593 = vshrl.u32 %v592, 7
    %v594 = vsub.s32 0, %v593
    %v595 = vrot.slane %v590, %v594
    %v596 = vlaneseq
    %v597 = vshrl.u32 %v596, 7
    %v598 = vsub.s32 1, %v597
    %v599 = vrot.slane %v590, %v598
    %v600 = vlaneseq
    %v601 = vshrl.u32 %v600, 7
    %v602 = vsub.s32 2, %v601
    %v603 = vrot.slane %v590, %v602
    %v604 = vlaneseq
    %v605 = vshrl.u32 %v604, 7
    %v606 = vsub.s32 3, %v605
    %v607 = vrot.slane %v590, %v606
    %v740 = vunpack.c.l.b16 %v462
    %v741 = vunpack.c.h.b16 %v462
    %v742 = vunpack.c.l.b16 %v463
    %v743 = vunpack.c.h.b16 %v463
    %v744 = vunpack.c.l.b16 %v464
    %v745 = vunpack.c.h.b16 %v464
    %v746 = vunpack.c.l.b16 %v465
    %v747 = vunpack.c.h.b16 %v465
    %v748 = vunpack.c.l.b16 %v466
    %v749 = vunpack.c.h.b16 %v466
    %v750 = vunpack.c.l.b16 %v467
    %v751 = vunpack.c.h.b16 %v467
    %v752 = vunpack.c.l.b16 %v468
    %v753 = vunpack.c.h.b16 %v468
    %v754 = vunpack.c.l.b16 %v469
    %v755 = vunpack.c.h.b16 %v469
    %v756 = vunpack.c.l.b16 %v470
    %v757 = vunpack.c.h.b16 %v470
    %v758 = vunpack.c.l.b16 %v471
    %v759 = vunpack.c.h.b16 %v471
    %v760 = vunpack.c.l.b16 %v472
    %v761 = vunpack.c.h.b16 %v472
    %v762 = vunpack.c.l.b16 %v473
    %v763 = vunpack.c.h.b16 %v473
    %v764 = vunpack.c.l.b16 %v474
    %v765 = vunpack.c.h.b16 %v474
    %v766 = vunpack.c.l.b16 %v475
    %v767 = vunpack.c.h.b16 %v475
    %v768 = vunpack.c.l.b16 %v476
    %v769 = vunpack.c.h.b16 %v476
    %v770 = vunpack.c.l.b16 %v477
    %v771 = vunpack.c.h.b16 %v477
    %v772 = vunpack.c.l.b16 %v478
    %v773 = vunpack.c.h.b16 %v478
    %v774 = vunpack.c.l.b16 %v479
    %v775 = vunpack.c.h.b16 %v479
    %v776 = vunpack.c.l.b16 %v480
    %v777 = vunpack.c.h.b16 %v480
    %v778 = vunpack.c.l.b16 %v481
    %v779 = vunpack.c.h.b16 %v481
    %v780 = vunpack.c.l.b16 %v482
    %v781 = vunpack.c.h.b16 %v482
    %v782 = vunpack.c.l.b16 %v483
    %v783 = vunpack.c.h.b16 %v483
    %v784 = vunpack.c.l.b16 %v484
    %v785 = vunpack.c.h.b16 %v484
    %v786 = vunpack.c.l.b16 %v485
    %v787 = vunpack.c.h.b16 %v485
    %v788 = vunpack.c.l.b16 %v486
    %v789 = vunpack.c.h.b16 %v486
    %v790 = vunpack.c.l.b16 %v487
    %v791 = vunpack.c.h.b16 %v487
    %v792 = vunpack.c.l.b16 %v488
    %v793 = vunpack.c.h.b16 %v488
    %v794 = vunpack.c.l.b16 %v489
    %v795 = vunpack.c.h.b16 %v489
    %v796 = vunpack.c.l.b16 %v490
    %v797 = vunpack.c.h.b16 %v490
    %v798 = vunpack.c.l.b16 %v491
    %v799 = vunpack.c.h.b16 %v491
    %v800 = vunpack.c.l.b16 %v492
    %v801 = vunpack.c.h.b16 %v492
    %v802 = vunpack.c.l.b16 %v493
    %v803 = vunpack.c.h.b16 %v493
    %v804 = vunpack.c.l.b16 %v494
    %v805 = vunpack.c.h.b16 %v494
    %v806 = vunpack.c.l.b16 %v495
    %v807 = vunpack.c.h.b16 %v495
    %v808 = vunpack.c.l.b16 %v496
    %v809 = vunpack.c.h.b16 %v496
    %v810 = vunpack.c.l.b16 %v497
    %v811 = vunpack.c.h.b16 %v497
    %v812 = vunpack.c.l.b16 %v498
    %v813 = vunpack.c.h.b16 %v498
    %v814 = vunpack.c.l.b16 %v499
    %v815 = vunpack.c.h.b16 %v499
    %v816 = vunpack.c.l.b16 %v500
    %v817 = vunpack.c.h.b16 %v500
    %v818 = vunpack.c.l.b16 %v501
    %v819 = vunpack.c.h.b16 %v501
    %v820 = vunpack.c.l.b16 %v502
    %v821 = vunpack.c.h.b16 %v502
    %v822 = vunpack.c.l.b16 %v503
    %v823 = vunpack.c.h.b16 %v503
    %v824 = vunpack.c.l.b16 %v504
    %v825 = vunpack.c.h.b16 %v504
    %v826 = vunpack.c.l.b16 %v505
    %v827 = vunpack.c.h.b16 %v505
    %v828 = vunpack.c.l.b16 %v506
    %v829 = vunpack.c.h.b16 %v506
    %v830 = vunpack.c.l.b16 %v507
    %v831 = vunpack.c.h.b16 %v507
    %v832 = vunpack.c.l.b16 %v508
    %v833 = vunpack.c.h.b16 %v508
    %v834 = vunpack.c.l.b16 %v509
    %v835 = vunpack.c.h.b16 %v509
    %v836 = vunpack.c.l.b16 %v510
    %v837 = vunpack.c.h.b16 %v510
    %v838 = vunpack.c.l.b16 %v511
    %v839 = vunpack.c.h.b16 %v511
    %v840 = vunpack.c.l.b16 %v512
    %v841 = vunpack.c.h.b16 %v512
    %v842 = vunpack.c.l.b16 %v513
    %v843 = vunpack.c.h.b16 %v513
    %v844 = vunpack.c.l.b16 %v514
    %v845 = vunpack.c.h.b16 %v514
    %v846 = vunpack.c.l.b16 %v515
    %v847 = vunpack.c.h.b16 %v515
    %v848 = vunpack.c.l.b16 %v516
    %v849 = vunpack.c.h.b16 %v516
    %v850 = vunpack.c.l.b16 %v517
    %v851 = vunpack.c.h.b16 %v517
    %v852 = vunpack.c.l.b16 %v518
    %v853 = vunpack.c.h.b16 %v518
    %v854 = vunpack.c.l.b16 %v519
    %v855 = vunpack.c.h.b16 %v519
    %v856 = vunpack.c.l.b16 %v520
    %v857 = vunpack.c.h.b16 %v520
    %v858 = vunpack.c.l.b16 %v521
    %v859 = vunpack.c.h.b16 %v521
    %v860 = vunpack.c.l.b16 %v522
    %v861 = vunpack.c.h.b16 %v522
    %v862 = vunpack.c.l.b16 %v523
    %v863 = vunpack.c.h.b16 %v523
    %v864 = vunpack.c.l.b16 %v524
    %v865 = vunpack.c.h.b16 %v524
    %v866 = vunpack.c.l.b16 %v525
    %v867 = vunpack.c.h.b16 %v525
    %v868 = vunpack.c.l.b16 %v526
    %v869 = vunpack.c.h.b16 %v526
    %v870 = vunpack.c.l.b16 %v527
    %v871 = vunpack.c.h.b16 %v527
    %v872 = vunpack.c.l.b16 %v528
    %v873 = vunpack.c.h.b16 %v528
    %v874 = vunpack.c.l.b16 %v529
    %v875 = vunpack.c.h.b16 %v529
    %v876 = vunpack.c.l.b16 %v530
    %v877 = vunpack.c.h.b16 %v530
    %v878 = vunpack.c.l.b16 %v531
    %v879 = vunpack.c.h.b16 %v531
    %v880 = vunpack.c.l.b16 %v532
    %v881 = vunpack.c.h.b16 %v532
    %v882 = vunpack.c.l.b16 %v533
    %v883 = vunpack.c.h.b16 %v533
    %v884 = vunpack.c.l.b16 %v534
    %v885 = vunpack.c.h.b16 %v534
    %v886 = vunpack.c.l.b16 %v535
    %v887 = vunpack.c.h.b16 %v535
    %v888 = vunpack.c.l.b16 %v536
    %v889 = vunpack.c.h.b16 %v536
    %v890 = vunpack.c.l.b16 %v537
    %v891 = vunpack.c.h.b16 %v537
    %v892 = vunpack.c.l.b16 %v538
    %v893 = vunpack.c.h.b16 %v538
    %v894 = vunpack.c.l.b16 %v539
    %v895 = vunpack.c.h.b16 %v539
    %v896 = vunpack.c.l.b16 %v540
    %v897 = vunpack.c.h.b16 %v540
    %v898 = vunpack.c.l.b16 %v541
    %v899 = vunpack.c.h.b16 %v541
    %v900 = vunpack.c.l.b16 %v542
    %v901 = vunpack.c.h.b16 %v542
    %v902 = vunpack.c.l.b16 %v543
    %v903 = vunpack.c.h.b16 %v543
    %v904 = vunpack.c.l.b16 %v544
    %v905 = vunpack.c.h.b16 %v544
    %v906 = vunpack.c.l.b16 %v545
    %v907 = vunpack.c.h.b16 %v545
    %v908 = vunpack.c.l.b16 %v546
    %v909 = vunpack.c.h.b16 %v546
    %v910 = vunpack.c.l.b16 %v547
    %v911 = vunpack.c.h.b16 %v547
    %v912 = vunpack.c.l.b16 %v548
    %v913 = vunpack.c.h.b16 %v548
    %v914 = vunpack.c.l.b16 %v549
    %v915 = vunpack.c.h.b16 %v549
    %v916 = vunpack.c.l.b16 %v550
    %v917 = vunpack.c.h.b16 %v550
    %v918 = vunpack.c.l.b16 %v551
    %v919 = vunpack.c.h.b16 %v551
    %v920 = vunpack.c.l.b16 %v552
    %v921 = vunpack.c.h.b16 %v552
    %v922 = vunpack.c.l.b16 %v553
    %v923 = vunpack.c.h.b16 %v553
    %v924 = vunpack.c.l.b16 %v554
    %v925 = vunpack.c.h.b16 %v554
    %v926 = vunpack.c.l.b16 %v555
    %v927 = vunpack.c.h.b16 %v555
    %v928 = vunpack.c.l.b16 %v556
    %v929 = vunpack.c.h.b16 %v556
    %v930 = vunpack.c.l.b16 %v557
    %v931 = vunpack.c.h.b16 %v557
    %v932 = vunpack.c.l.b16 %v558
    %v933 = vunpack.c.h.b16 %v558
    %v934 = vunpack.c.l.b16 %v559
    %v935 = vunpack.c.h.b16 %v559
    %v936 = vunpack.c.l.b16 %v560
    %v937 = vunpack.c.h.b16 %v560
    %v938 = vunpack.c.l.b16 %v561
    %v939 = vunpack.c.h.b16 %v561
    %v940 = vunpack.c.l.b16 %v562
    %v941 = vunpack.c.h.b16 %v562
    %v942 = vunpack.c.l.b16 %v563
    %v943 = vunpack.c.h.b16 %v563
    %v944 = vunpack.c.l.b16 %v564
    %v945 = vunpack.c.h.b16 %v564
    %v946 = vunpack.c.l.b16 %v565
    %v947 = vunpack.c.h.b16 %v565
    %v948 = vunpack.c.l.b16 %v566
    %v949 = vunpack.c.h.b16 %v566
    %v950 = vunpack.c.l.b16 %v567
    %v951 = vunpack.c.h.b16 %v567
    %v952 = vunpack.c.l.b16 %v568
    %v953 = vunpack.c.h.b16 %v568
    %v954 = vunpack.c.l.b16 %v569
    %v955 = vunpack.c.h.b16 %v569
    %v956 = vunpack.c.l.b16 %v570
    %v957 = vunpack.c.h.b16 %v570
    %v958 = vunpack.c.l.b16 %v571
    %v959 = vunpack.c.h.b16 %v571
    %v960 = vunpack.c.l.b16 %v572
    %v961 = vunpack.c.h.b16 %v572
    %v962 = vunpack.c.l.b16 %v573
    %v963 = vunpack.c.h.b16 %v573
    %v964 = vunpack.c.l.b16 %v574
    %v965 = vunpack.c.h.b16 %v574
    %v966 = vunpack.c.l.b16 %v575
    %v967 = vunpack.c.h.b16 %v575
    %v968 = vunpack.c.l.b16 %v576
    %v969 = vunpack.c.h.b16 %v576
    %v970 = vunpack.c.l.b16 %v577
    %v971 = vunpack.c.h.b16 %v577
    %v972 = vunpack.c.l.b16 %v578
    %v973 = vunpack.c.h.b16 %v578
    %v974 = vunpack.c.l.b16 %v579
    %v975 = vunpack.c.h.b16 %v579
    %v976 = vunpack.c.l.b16 %v580
    %v977 = vunpack.c.h.b16 %v580
    %v978 = vunpack.c.l.b16 %v581
    %v979 = vunpack.c.h.b16 %v581
    %v980 = vunpack.c.l.b16 %v582
    %v981 = vunpack.c.h.b16 %v582
    %v982 = vunpack.c.l.b16 %v583
    %v983 = vunpack.c.h.b16 %v583
    %v984 = vunpack.c.l.b16 %v584
    %v985 = vunpack.c.h.b16 %v584
    %v986 = vunpack.c.l.b16 %v585
    %v987 = vunpack.c.h.b16 %v585
    %v988 = vunpack.c.l.b16 %v586
    %v989 = vunpack.c.h.b16 %v586
    %v990 = vunpack.c.l.b16 %v587
    %v991 = vunpack.c.h.b16 %v587
    %v992 = vunpack.c.l.b16 %v588
    %v993 = vunpack.c.h.b16 %v588
    %v994 = vunpack.c.l.b16 %v589
    %v995 = vunpack.c.h.b16 %v589
    %v996 = vpack.c.b16 %v744, %v740
    %v997 = vpack.c.b16 %v745, %v741
    %v998 = vpack.c.b16 %v746, %v742
    %v999 = vpack.c.b16 %v747, %v743
    %v1000 = vpack.c.b16 %v752, %v748
    %v1001 = vpack.c.b16 %v753, %v749
    %v1002 = vpack.c.b16 %v754, %v750
    %v1003 = vpack.c.b16 %v755, %v751
    %v1004 = vpack.c.b16 %v760, %v756
    %v1005 = vpack.c.b16 %v761, %v757
    %v1006 = vpack.c.b16 %v762, %v758
    %v1007 = vpack.c.b16 %v763, %v759
    %v1008 = vpack.c.b16 %v768, %v764
    %v1009 = vpack.c.b16 %v769, %v765
    %v1010 = vpack.c.b16 %v770, %v766
    %v1011 = vpack.c.b16 %v771, %v767
    %v1012 = vpack.c.b16 %v776, %v772
    %v1013 = vpack.c.b16 %v777, %v773
    %v1014 = vpack.c.b16 %v778, %v774
    %v1015 = vpack.c.b16 %v779, %v775
    %v1016 = vpack.c.b16 %v784, %v780
    %v1017 = vpack.c.b16 %v785, %v781
    %v1018 = vpack.c.b16 %v786, %v782
    %v1019 = vpack.c.b16 %v787, %v783
    %v1020 = vpack.c.b16 %v792, %v788
    %v1021 = vpack.c.b16 %v793, %v789
    %v1022 = vpack.c.b16 %v794, %v790
    %v1023 = vpack.c.b16 %v795, %v791
    %v1024 = vpack.c.b16 %v800, %v796
    %v1025 = vpack.c.b16 %v801, %v797
    %v1026 = vpack.c.b16 %v802, %v798
    %v1027 = vpack.c.b16 %v803, %v799
    %v1028 = vpack.c.b16 %v808, %v804
    %v1029 = vpack.c.b16 %v809, %v805
    %v1030 = vpack.c.b16 %v810, %v806
    %v1031 = vpack.c.b16 %v811, %v807
    %v1032 = vpack.c.b16 %v816, %v812
    %v1033 = vpack.c.b16 %v817, %v813
    %v1034 = vpack.c.b16 %v818, %v814
    %v1035 = vpack.c.b16 %v819, %v815
    %v1036 = vpack.c.b16 %v824, %v820
    %v1037 = vpack.c.b16 %v825, %v821
    %v1038 = vpack.c.b16 %v826, %v822
    %v1039 = vpack.c.b16 %v827, %v823
    %v1040 = vpack.c.b16 %v832, %v828
    %v1041 = vpack.c.b16 %v833, %v829
    %v1042 = vpack.c.b16 %v834, %v830
    %v1043 = vpack.c.b16 %v835, %v831
    %v1044 = vpack.c.b16 %v840, %v836
    %v1045 = vpack.c.b16 %v841, %v837
    %v1046 = vpack.c.b16 %v842, %v838
    %v1047 = vpack.c.b16 %v843, %v839
    %v1048 = vpack.c.b16 %v848, %v844
    %v1049 = vpack.c.b16 %v849, %v845
    %v1050 = vpack.c.b16 %v850, %v846
    %v1051 = vpack.c.b16 %v851, %v847
    %v1052 = vpack.c.b16 %v856, %v852
    %v1053 = vpack.c.b16 %v857, %v853
    %v1054 = vpack.c.b16 %v858, %v854
    %v1055 = vpack.c.b16 %v859, %v855
    %v1056 = vpack.c.b16 %v864, %v860
    %v1057 = vpack.c.b16 %v865, %v861
    %v1058 = vpack.c.b16 %v866, %v862
    %v1059 = vpack.c.b16 %v867, %v863
    %v1060 = vpack.c.b16 %v872, %v868
    %v1061 = vpack.c.b16 %v873, %v869
    %v1062 = vpack.c.b16 %v874, %v870
    %v1063 = vpack.c.b16 %v875, %v871
    %v1064 = vpack.c.b16 %v880, %v876
    %v1065 = vpack.c.b16 %v881, %v877
    %v1066 = vpack.c.b16 %v882, %v878
    %v1067 = vpack.c.b16 %v883, %v879
    %v1068 = vpack.c.b16 %v888, %v884
    %v1069 = vpack.c.b16 %v889, %v885
    %v1070 = vpack.c.b16 %v890, %v886
    %v1071 = vpack.c.b16 %v891, %v887
    %v1072 = vpack.c.b16 %v896, %v892
    %v1073 = vpack.c.b16 %v897, %v893
    %v1074 = vpack.c.b16 %v898, %v894
    %v1075 = vpack.c.b16 %v899, %v895
    %v1076 = vpack.c.b16 %v904, %v900
    %v1077 = vpack.c.b16 %v905, %v901
    %v1078 = vpack.c.b16 %v906, %v902
    %v1079 = vpack.c.b16 %v907, %v903
    %v1080 = vpack.c.b16 %v912, %v908
    %v1081 = vpack.c.b16 %v913, %v909
    %v1082 = vpack.c.b16 %v914, %v910
    %v1083 = vpack.c.b16 %v915, %v911
    %v1084 = vpack.c.b16 %v920, %v916
    %v1085 = vpack.c.b16 %v921, %v917
    %v1086 = vpack.c.b16 %v922, %v918
    %v1087 = vpack.c.b16 %v923, %v919
    %v1088 = vpack.c.b16 %v928, %v924
    %v1089 = vpack.c.b16 %v929, %v925
    %v1090 = vpack.c.b16 %v930, %v926
    %v1091 = vpack.c.b16 %v931, %v927
    %v1092 = vpack.c.b16 %v936, %v932
    %v1093 = vpack.c.b16 %v937, %v933
    %v1094 = vpack.c.b16 %v938, %v934
    %v1095 = vpack.c.b16 %v939, %v935
    %v1096 = vpack.c.b16 %v944, %v940
    %v1097 = vpack.c.b16 %v945, %v941
    %v1098 = vpack.c.b16 %v946, %v942
    %v1099 = vpack.c.b16 %v947, %v943
    %v1100 = vpack.c.b16 %v952, %v948
    %v1101 = vpack.c.b16 %v953, %v949
    %v1102 = vpack.c.b16 %v954, %v950
    %v1103 = vpack.c.b16 %v955, %v951
    %v1104 = vpack.c.b16 %v960, %v956
    %v1105 = vpack.c.b16 %v961, %v957
    %v1106 = vpack.c.b16 %v962, %v958
    %v1107 = vpack.c.b16 %v963, %v959
    %v1108 = vpack.c.b16 %v968, %v964
    %v1109 = vpack.c.b16 %v969, %v965
    %v1110 = vpack.c.b16 %v970, %v966
    %v1111 = vpack.c.b16 %v971, %v967
    %v1112 = vpack.c.b16 %v976, %v972
    %v1113 = vpack.c.b16 %v977, %v973
    %v1114 = vpack.c.b16 %v978, %v974
    %v1115 = vpack.c.b16 %v979, %v975
    %v1116 = vpack.c.b16 %v984, %v980
    %v1117 = vpack.c.b16 %v985, %v981
    %v1118 = vpack.c.b16 %v986, %v982
    %v1119 = vpack.c.b16 %v987, %v983
    %v1120 = vpack.c.b16 %v992, %v988
    %v1121 = vpack.c.b16 %v993, %v989
    %v1122 = vpack.c.b16 %v994, %v990
    %v1123 = vpack.c.b16 %v995, %v991
    %1252 = vmatprep.subr.bf16.mxu0 %v997
    %1253 = vmatpush1.bf16.msra.mxu0 %v996
    %1254 = vmatprep.subr.bf16.mxu0 %v1001
    %1255 = vmatpush1.bf16.msra.mxu0 %v1000
    %1256 = vmatprep.subr.bf16.mxu0 %v1005
    %1257 = vmatpush1.bf16.msra.mxu0 %v1004
    %1258 = vmatprep.subr.bf16.mxu0 %v1009
    %1259 = vmatpush1.bf16.msra.mxu0 %v1008
    %1260 = vmatprep.subr.bf16.mxu0 %v1013
    %1261 = vmatpush1.bf16.msra.mxu0 %v1012
    %1262 = vmatprep.subr.bf16.mxu0 %v1017
    %1263 = vmatpush1.bf16.msra.mxu0 %v1016
    %1264 = vmatprep.subr.bf16.mxu0 %v1021
    %1265 = vmatpush1.bf16.msra.mxu0 %v1020
    %1266 = vmatprep.subr.bf16.mxu0 %v1025
    %1267 = vmatpush1.bf16.msra.mxu0 %v1024
    %1268 = vmatprep.subr.bf16.mxu0 %v1029
    %1269 = vmatpush1.bf16.msra.mxu0 %v1028
    %1270 = vmatprep.subr.bf16.mxu0 %v1033
    %1271 = vmatpush1.bf16.msra.mxu0 %v1032
    %1272 = vmatprep.subr.bf16.mxu0 %v1037
    %1273 = vmatpush1.bf16.msra.mxu0 %v1036
    %1274 = vmatprep.subr.bf16.mxu0 %v1041
    %1275 = vmatpush1.bf16.msra.mxu0 %v1040
    %1276 = vmatprep.subr.bf16.mxu0 %v1045
    %1277 = vmatpush1.bf16.msra.mxu0 %v1044
    %1278 = vmatprep.subr.bf16.mxu0 %v1049
    %1279 = vmatpush1.bf16.msra.mxu0 %v1048
    %1280 = vmatprep.subr.bf16.mxu0 %v1053
    %1281 = vmatpush1.bf16.msra.mxu0 %v1052
    %1282 = vmatprep.subr.bf16.mxu0 %v1057
    %1283 = vmatpush1.bf16.msra.mxu0 %v1056
    %1284 = vmatprep.mubr.bf16.mxu0 %v459
    %1285 = vmatmul.mubr.bf16.gmra.mrb[0].mxu0 %v458
    %v1286 = vpop.f32.mrb[0].mxu0
    %v1287 = vadd.f32 %v595, %v1286
    %v1288 = vpop.f32.mrb[0].mxu0
    %v1289 = vadd.f32 %v599, %v1288
    %v1290 = vpop.f32.mrb[0].mxu0
    %v1291 = vpop.f32.mrb[0].mxu0
    %1292 = vdwg.mxu0
    %1293 = vmatprep.subr.bf16.mxu0 %v1061
    %1294 = vmatpush1.bf16.msra.mxu0 %v1060
    %1295 = vmatprep.subr.bf16.mxu0 %v1065
    %1296 = vmatpush1.bf16.msra.mxu0 %v1064
    %1297 = vmatprep.subr.bf16.mxu0 %v1069
    %1298 = vmatpush1.bf16.msra.mxu0 %v1068
    %1299 = vmatprep.subr.bf16.mxu0 %v1073
    %1300 = vmatpush1.bf16.msra.mxu0 %v1072
    %1301 = vmatprep.subr.bf16.mxu0 %v1077
    %1302 = vmatpush1.bf16.msra.mxu0 %v1076
    %1303 = vmatprep.subr.bf16.mxu0 %v1081
    %1304 = vmatpush1.bf16.msra.mxu0 %v1080
    %1305 = vmatprep.subr.bf16.mxu0 %v1085
    %1306 = vmatpush1.bf16.msra.mxu0 %v1084
    %1307 = vmatprep.subr.bf16.mxu0 %v1089
    %1308 = vmatpush1.bf16.msra.mxu0 %v1088
    %1309 = vmatprep.subr.bf16.mxu0 %v1093
    %1310 = vmatpush1.bf16.msra.mxu0 %v1092
    %1311 = vmatprep.subr.bf16.mxu0 %v1097
    %1312 = vmatpush1.bf16.msra.mxu0 %v1096
    %1313 = vmatprep.subr.bf16.mxu0 %v1101
    %1314 = vmatpush1.bf16.msra.mxu0 %v1100
    %1315 = vmatprep.subr.bf16.mxu0 %v1105
    %1316 = vmatpush1.bf16.msra.mxu0 %v1104
    %1317 = vmatprep.subr.bf16.mxu0 %v1109
    %1318 = vmatpush1.bf16.msra.mxu0 %v1108
    %1319 = vmatprep.subr.bf16.mxu0 %v1113
    %1320 = vmatpush1.bf16.msra.mxu0 %v1112
    %1321 = vmatprep.subr.bf16.mxu0 %v1117
    %1322 = vmatpush1.bf16.msra.mxu0 %v1116
    %1323 = vmatprep.subr.bf16.mxu0 %v1121
    %1324 = vmatpush1.bf16.msra.mxu0 %v1120
    %1325 = vmatprep.mubr.bf16.mxu0 %v461
    %1326 = vmatmul.mubr.bf16.gmra.mrb[0].mxu0 %v460
    %v1327 = vpop.f32.mrb[0].mxu0
    %v1328 = vadd.f32 %v1287, %v1327
    %v1329 = vpop.f32.mrb[0].mxu0
    %v1330 = vadd.f32 %v1289, %v1329
    %v1331 = vpop.f32.mrb[0].mxu0
    %v1332 = vpop.f32.mrb[0].mxu0
    %1333 = vdwg.mxu0
    %1334 = vmatprep.subr.bf16.mxu0 %v999
    %1335 = vmatpush1.bf16.msra.mxu0 %v998
    %1336 = vmatprep.subr.bf16.mxu0 %v1003
    %1337 = vmatpush1.bf16.msra.mxu0 %v1002
    %1338 = vmatprep.subr.bf16.mxu0 %v1007
    %1339 = vmatpush1.bf16.msra.mxu0 %v1006
    %1340 = vmatprep.subr.bf16.mxu0 %v1011
    %1341 = vmatpush1.bf16.msra.mxu0 %v1010
    %1342 = vmatprep.subr.bf16.mxu0 %v1015
    %1343 = vmatpush1.bf16.msra.mxu0 %v1014
    %1344 = vmatprep.subr.bf16.mxu0 %v1019
    %1345 = vmatpush1.bf16.msra.mxu0 %v1018
    %1346 = vmatprep.subr.bf16.mxu0 %v1023
    %1347 = vmatpush1.bf16.msra.mxu0 %v1022
    %1348 = vmatprep.subr.bf16.mxu0 %v1027
    %1349 = vmatpush1.bf16.msra.mxu0 %v1026
    %1350 = vmatprep.subr.bf16.mxu0 %v1031
    %1351 = vmatpush1.bf16.msra.mxu0 %v1030
    %1352 = vmatprep.subr.bf16.mxu0 %v1035
    %1353 = vmatpush1.bf16.msra.mxu0 %v1034
    %1354 = vmatprep.subr.bf16.mxu0 %v1039
    %1355 = vmatpush1.bf16.msra.mxu0 %v1038
    %1356 = vmatprep.subr.bf16.mxu0 %v1043
    %1357 = vmatpush1.bf16.msra.mxu0 %v1042
    %1358 = vmatprep.subr.bf16.mxu0 %v1047
    %1359 = vmatpush1.bf16.msra.mxu0 %v1046
    %1360 = vmatprep.subr.bf16.mxu0 %v1051
    %1361 = vmatpush1.bf16.msra.mxu0 %v1050
    %1362 = vmatprep.subr.bf16.mxu0 %v1055
    %1363 = vmatpush1.bf16.msra.mxu0 %v1054
    %1364 = vmatprep.subr.bf16.mxu0 %v1059
    %1365 = vmatpush1.bf16.msra.mxu0 %v1058
    %1366 = vmatprep.mubr.bf16.mxu0 %v459
    %1367 = vmatmul.mubr.bf16.gmra.mrb[0].mxu0 %v458
    %v1368 = vpop.f32.mrb[0].mxu0
    %v1369 = vadd.f32 %v603, %v1368
    %v1370 = vpop.f32.mrb[0].mxu0
    %v1371 = vadd.f32 %v607, %v1370
    %v1372 = vpop.f32.mrb[0].mxu0
    %v1373 = vpop.f32.mrb[0].mxu0
    %1374 = vdwg.mxu0
    %1375 = vmatprep.subr.bf16.mxu0 %v1063
    %1376 = vmatpush1.bf16.msra.mxu0 %v1062
    %1377 = vmatprep.subr.bf16.mxu0 %v1067
    %1378 = vmatpush1.bf16.msra.mxu0 %v1066
    %1379 = vmatprep.subr.bf16.mxu0 %v1071
    %1380 = vmatpush1.bf16.msra.mxu0 %v1070
    %1381 = vmatprep.subr.bf16.mxu0 %v1075
    %1382 = vmatpush1.bf16.msra.mxu0 %v1074
    %1383 = vmatprep.subr.bf16.mxu0 %v1079
    %1384 = vmatpush1.bf16.msra.mxu0 %v1078
    %1385 = vmatprep.subr.bf16.mxu0 %v1083
    %1386 = vmatpush1.bf16.msra.mxu0 %v1082
    %1387 = vmatprep.subr.bf16.mxu0 %v1087
    %1388 = vmatpush1.bf16.msra.mxu0 %v1086
    %1389 = vmatprep.subr.bf16.mxu0 %v1091
    %1390 = vmatpush1.bf16.msra.mxu0 %v1090
    %1391 = vmatprep.subr.bf16.mxu0 %v1095
    %1392 = vmatpush1.bf16.msra.mxu0 %v1094
    %1393 = vmatprep.subr.bf16.mxu0 %v1099
    %1394 = vmatpush1.bf16.msra.mxu0 %v1098
    %1395 = vmatprep.subr.bf16.mxu0 %v1103
    %1396 = vmatpush1.bf16.msra.mxu0 %v1102
    %1397 = vmatprep.subr.bf16.mxu0 %v1107
    %1398 = vmatpush1.bf16.msra.mxu0 %v1106
    %1399 = vmatprep.subr.bf16.mxu0 %v1111
    %1400 = vmatpush1.bf16.msra.mxu0 %v1110
    %1401 = vmatprep.subr.bf16.mxu0 %v1115
    %1402 = vmatpush1.bf16.msra.mxu0 %v1114
    %1403 = vmatprep.subr.bf16.mxu0 %v1119
    %1404 = vmatpush1.bf16.msra.mxu0 %v1118
    %1405 = vmatprep.subr.bf16.mxu0 %v1123
    %1406 = vmatpush1.bf16.msra.mxu0 %v1122
    %1407 = vmatprep.mubr.bf16.mxu0 %v461
    %1408 = vmatmul.mubr.bf16.gmra.mrb[0].mxu0 %v460
    %v1409 = vpop.f32.mrb[0].mxu0
    %v1410 = vadd.f32 %v1369, %v1409
    %v1411 = vpop.f32.mrb[0].mxu0
    %v1412 = vadd.f32 %v1371, %v1411
    %v1413 = vpop.f32.mrb[0].mxu0
    %v1414 = vpop.f32.mrb[0].mxu0
    %1415 = vdwg.mxu0
    %v1416 = vmax.f32 %v1328, 0.0
    %v1417 = vmax.f32 %v1330, 0.0
    %v1418 = vmax.f32 %v1410, 0.0
    %v1419 = vmax.f32 %v1412, 0.0
    %v1420 = vpack.c.bf16 %v1416, %v1416
    %v1421 = vpack.c.bf16 %v1417, %v1417
    %v1422 = vpack.c.bf16 %v1418, %v1418
    %v1423 = vpack.c.bf16 %v1419, %v1419
    %v1424 = vld [vmem:[#allocation10] sm:$0xf]
    %v1425 = vld [vmem:[#allocation10 + $0x4] sm:$0xf]
    %v1426 = vld [vmem:[#allocation10 + $0x8] sm:$0xf]
    %v1427 = vld [vmem:[#allocation10 + $0xc] sm:$0xf]
    %v1428 = vld [vmem:[#allocation10 + $0x10] sm:$0xf]
    %v1429 = vld [vmem:[#allocation10 + $0x14] sm:$0xf]
    %v1430 = vld [vmem:[#allocation10 + $0x18] sm:$0xf]
    %v1431 = vld [vmem:[#allocation10 + $0x1c] sm:$0xf]
    %v1432 = vld [vmem:[#allocation10 + $0x20] sm:$0xf]
    %v1433 = vld [vmem:[#allocation10 + $0x24] sm:$0xf]
    %v1434 = vld [vmem:[#allocation10 + $0x28] sm:$0xf]
    %v1435 = vld [vmem:[#allocation10 + $0x2c] sm:$0xf]
    %v1436 = vld [vmem:[#allocation10 + $0x30] sm:$0xf]
    %v1437 = vld [vmem:[#allocation10 + $0x34] sm:$0xf]
    %v1438 = vld [vmem:[#allocation10 + $0x38] sm:$0xf]
    %v1439 = vld [vmem:[#allocation10 + $0x3c] sm:$0xf]
    %v1440 = vld [vmem:[#allocation10 + $0x40] sm:$0xf]
    %v1441 = vld [vmem:[#allocation10 + $0x44] sm:$0xf]
    %v1442 = vld [vmem:[#allocation10 + $0x48] sm:$0xf]
    %v1443 = vld [vmem:[#allocation10 + $0x4c] sm:$0xf]
    %v1444 = vld [vmem:[#allocation10 + $0x50] sm:$0xf]
    %v1445 = vld [vmem:[#allocation10 + $0x54] sm:$0xf]
    %v1446 = vld [vmem:[#allocation10 + $0x58] sm:$0xf]
    %v1447 = vld [vmem:[#allocation10 + $0x5c] sm:$0xf]
    %v1448 = vld [vmem:[#allocation10 + $0x60] sm:$0xf]
    %v1449 = vld [vmem:[#allocation10 + $0x64] sm:$0xf]
    %v1450 = vld [vmem:[#allocation10 + $0x68] sm:$0xf]
    %v1451 = vld [vmem:[#allocation10 + $0x6c] sm:$0xf]
    %v1452 = vld [vmem:[#allocation10 + $0x70] sm:$0xf]
    %v1453 = vld [vmem:[#allocation10 + $0x74] sm:$0xf]
    %v1454 = vld [vmem:[#allocation10 + $0x78] sm:$0xf]
    %v1455 = vld [vmem:[#allocation10 + $0x7c] sm:$0xf]
    %v1456 = vld [vmem:[#allocation10 + $0x80] sm:$0xf]
    %v1457 = vld [vmem:[#allocation10 + $0x84] sm:$0xf]
    %v1458 = vld [vmem:[#allocation10 + $0x88] sm:$0xf]
    %v1459 = vld [vmem:[#allocation10 + $0x8c] sm:$0xf]
    %v1460 = vld [vmem:[#allocation10 + $0x90] sm:$0xf]
    %v1461 = vld [vmem:[#allocation10 + $0x94] sm:$0xf]
    %v1462 = vld [vmem:[#allocation10 + $0x98] sm:$0xf]
    %v1463 = vld [vmem:[#allocation10 + $0x9c] sm:$0xf]
    %v1464 = vld [vmem:[#allocation10 + $0xa0] sm:$0xf]
    %v1465 = vld [vmem:[#allocation10 + $0xa4] sm:$0xf]
    %v1466 = vld [vmem:[#allocation10 + $0xa8] sm:$0xf]
    %v1467 = vld [vmem:[#allocation10 + $0xac] sm:$0xf]
    %v1468 = vld [vmem:[#allocation10 + $0xb0] sm:$0xf]
    %v1469 = vld [vmem:[#allocation10 + $0xb4] sm:$0xf]
    %v1470 = vld [vmem:[#allocation10 + $0xb8] sm:$0xf]
    %v1471 = vld [vmem:[#allocation10 + $0xbc] sm:$0xf]
    %v1472 = vld [vmem:[#allocation10 + $0xc0] sm:$0xf]
    %v1473 = vld [vmem:[#allocation10 + $0xc4] sm:$0xf]
    %v1474 = vld [vmem:[#allocation10 + $0xc8] sm:$0xf]
    %v1475 = vld [vmem:[#allocation10 + $0xcc] sm:$0xf]
    %v1476 = vld [vmem:[#allocation10 + $0xd0] sm:$0xf]
    %v1477 = vld [vmem:[#allocation10 + $0xd4] sm:$0xf]
    %v1478 = vld [vmem:[#allocation10 + $0xd8] sm:$0xf]
    %v1479 = vld [vmem:[#allocation10 + $0xdc] sm:$0xf]
    %v1480 = vld [vmem:[#allocation10 + $0xe0] sm:$0xf]
    %v1481 = vld [vmem:[#allocation10 + $0xe4] sm:$0xf]
    %v1482 = vld [vmem:[#allocation10 + $0xe8] sm:$0xf]
    %v1483 = vld [vmem:[#allocation10 + $0xec] sm:$0xf]
    %v1484 = vld [vmem:[#allocation10 + $0xf0] sm:$0xf]
    %v1485 = vld [vmem:[#allocation10 + $0xf4] sm:$0xf]
    %v1486 = vld [vmem:[#allocation10 + $0xf8] sm:$0xf]
    %v1487 = vld [vmem:[#allocation10 + $0xfc] sm:$0xf]
    %v1488 = vld [vmem:[%s7] sm:$0x1]
    %v1490 = vlaneseq
    %v1491 = vshrl.u32 %v1490, 7
    %v1492 = vsub.s32 0, %v1491
    %v1493 = vrot.slane %v1488, %v1492
    %v1559 = vunpack.c.l.b16 %v1424
    %v1560 = vunpack.c.l.b16 %v1425
    %v1561 = vunpack.c.l.b16 %v1426
    %v1562 = vunpack.c.l.b16 %v1427
    %v1563 = vunpack.c.l.b16 %v1428
    %v1564 = vunpack.c.l.b16 %v1429
    %v1565 = vunpack.c.l.b16 %v1430
    %v1566 = vunpack.c.l.b16 %v1431
    %v1567 = vunpack.c.l.b16 %v1432
    %v1568 = vunpack.c.l.b16 %v1433
    %v1569 = vunpack.c.l.b16 %v1434
    %v1570 = vunpack.c.l.b16 %v1435
    %v1571 = vunpack.c.l.b16 %v1436
    %v1572 = vunpack.c.l.b16 %v1437
    %v1573 = vunpack.c.l.b16 %v1438
    %v1574 = vunpack.c.l.b16 %v1439
    %v1575 = vunpack.c.l.b16 %v1440
    %v1576 = vunpack.c.l.b16 %v1441
    %v1577 = vunpack.c.l.b16 %v1442
    %v1578 = vunpack.c.l.b16 %v1443
    %v1579 = vunpack.c.l.b16 %v1444
    %v1580 = vunpack.c.l.b16 %v1445
    %v1581 = vunpack.c.l.b16 %v1446
    %v1582 = vunpack.c.l.b16 %v1447
    %v1583 = vunpack.c.l.b16 %v1448
    %v1584 = vunpack.c.l.b16 %v1449
    %v1585 = vunpack.c.l.b16 %v1450
    %v1586 = vunpack.c.l.b16 %v1451
    %v1587 = vunpack.c.l.b16 %v1452
    %v1588 = vunpack.c.l.b16 %v1453
    %v1589 = vunpack.c.l.b16 %v1454
    %v1590 = vunpack.c.l.b16 %v1455
    %v1591 = vunpack.c.l.b16 %v1456
    %v1592 = vunpack.c.l.b16 %v1457
    %v1593 = vunpack.c.l.b16 %v1458
    %v1594 = vunpack.c.l.b16 %v1459
    %v1595 = vunpack.c.l.b16 %v1460
    %v1596 = vunpack.c.l.b16 %v1461
    %v1597 = vunpack.c.l.b16 %v1462
    %v1598 = vunpack.c.l.b16 %v1463
    %v1599 = vunpack.c.l.b16 %v1464
    %v1600 = vunpack.c.l.b16 %v1465
    %v1601 = vunpack.c.l.b16 %v1466
    %v1602 = vunpack.c.l.b16 %v1467
    %v1603 = vunpack.c.l.b16 %v1468
    %v1604 = vunpack.c.l.b16 %v1469
    %v1605 = vunpack.c.l.b16 %v1470
    %v1606 = vunpack.c.l.b16 %v1471
    %v1607 = vunpack.c.l.b16 %v1472
    %v1608 = vunpack.c.l.b16 %v1473
    %v1609 = vunpack.c.l.b16 %v1474
    %v1610 = vunpack.c.l.b16 %v1475
    %v1611 = vunpack.c.l.b16 %v1476
    %v1612 = vunpack.c.l.b16 %v1477
    %v1613 = vunpack.c.l.b16 %v1478
    %v1614 = vunpack.c.l.b16 %v1479
    %v1615 = vunpack.c.l.b16 %v1480
    %v1616 = vunpack.c.l.b16 %v1481
    %v1617 = vunpack.c.l.b16 %v1482
    %v1618 = vunpack.c.l.b16 %v1483
    %v1619 = vunpack.c.l.b16 %v1484
    %v1620 = vunpack.c.l.b16 %v1485
    %v1621 = vunpack.c.l.b16 %v1486
    %v1622 = vunpack.c.l.b16 %v1487
    %v1623 = vpack.c.b16 %v1560, %v1559
    %v1624 = vpack.c.b16 %v1562, %v1561
    %v1625 = vpack.c.b16 %v1564, %v1563
    %v1626 = vpack.c.b16 %v1566, %v1565
    %v1627 = vpack.c.b16 %v1568, %v1567
    %v1628 = vpack.c.b16 %v1570, %v1569
    %v1629 = vpack.c.b16 %v1572, %v1571
    %v1630 = vpack.c.b16 %v1574, %v1573
    %v1631 = vpack.c.b16 %v1576, %v1575
    %v1632 = vpack.c.b16 %v1578, %v1577
    %v1633 = vpack.c.b16 %v1580, %v1579
    %v1634 = vpack.c.b16 %v1582, %v1581
    %v1635 = vpack.c.b16 %v1584, %v1583
    %v1636 = vpack.c.b16 %v1586, %v1585
    %v1637 = vpack.c.b16 %v1588, %v1587
    %v1638 = vpack.c.b16 %v1590, %v1589
    %v1639 = vpack.c.b16 %v1592, %v1591
    %v1640 = vpack.c.b16 %v1594, %v1593
    %v1641 = vpack.c.b16 %v1596, %v1595
    %v1642 = vpack.c.b16 %v1598, %v1597
    %v1643 = vpack.c.b16 %v1600, %v1599
    %v1644 = vpack.c.b16 %v1602, %v1601
    %v1645 = vpack.c.b16 %v1604, %v1603
    %v1646 = vpack.c.b16 %v1606, %v1605
    %v1647 = vpack.c.b16 %v1608, %v1607
    %v1648 = vpack.c.b16 %v1610, %v1609
    %v1649 = vpack.c.b16 %v1612, %v1611
    %v1650 = vpack.c.b16 %v1614, %v1613
    %v1651 = vpack.c.b16 %v1616, %v1615
    %v1652 = vpack.c.b16 %v1618, %v1617
    %v1653 = vpack.c.b16 %v1620, %v1619
    %v1654 = vpack.c.b16 %v1622, %v1621
    %1687 = vmatprep.subr.bf16.mxu0 0
    %1688 = vmatpush1.bf16.msra.mxu0 %v1623
    %1689 = vmatprep.subr.bf16.mxu0 0
    %1690 = vmatpush1.bf16.msra.mxu0 %v1624
    %1691 = vmatprep.subr.bf16.mxu0 0
    %1692 = vmatpush1.bf16.msra.mxu0 %v1625
    %1693 = vmatprep.subr.bf16.mxu0 0
    %1694 = vmatpush1.bf16.msra.mxu0 %v1626
    %1695 = vmatprep.subr.bf16.mxu0 0
    %1696 = vmatpush1.bf16.msra.mxu0 %v1627
    %1697 = vmatprep.subr.bf16.mxu0 0
    %1698 = vmatpush1.bf16.msra.mxu0 %v1628
    %1699 = vmatprep.subr.bf16.mxu0 0
    %1700 = vmatpush1.bf16.msra.mxu0 %v1629
    %1701 = vmatprep.subr.bf16.mxu0 0
    %1702 = vmatpush1.bf16.msra.mxu0 %v1630
    %1703 = vmatprep.subr.bf16.mxu0 0
    %1704 = vmatpush1.bf16.msra.mxu0 %v1631
    %1705 = vmatprep.subr.bf16.mxu0 0
    %1706 = vmatpush1.bf16.msra.mxu0 %v1632
    %1707 = vmatprep.subr.bf16.mxu0 0
    %1708 = vmatpush1.bf16.msra.mxu0 %v1633
    %1709 = vmatprep.subr.bf16.mxu0 0
    %1710 = vmatpush1.bf16.msra.mxu0 %v1634
    %1711 = vmatprep.subr.bf16.mxu0 0
    %1712 = vmatpush1.bf16.msra.mxu0 %v1635
    %1713 = vmatprep.subr.bf16.mxu0 0
    %1714 = vmatpush1.bf16.msra.mxu0 %v1636
    %1715 = vmatprep.subr.bf16.mxu0 0
    %1716 = vmatpush1.bf16.msra.mxu0 %v1637
    %1717 = vmatprep.subr.bf16.mxu0 0
    %1718 = vmatpush1.bf16.msra.mxu0 %v1638
    %1719 = vmatprep.mubr.bf16.mxu0 %v1421
    %1720 = vmatmul.mubr.bf16.gmra.mrb[0].mxu0 %v1420
    %v1721 = vpop.f32.mrb[0].mxu0
    %v1722 = vadd.f32 %v1493, %v1721
    %v1723 = vpop.f32.mrb[0].mxu0
    %v1724 = vpop.f32.mrb[0].mxu0
    %v1725 = vpop.f32.mrb[0].mxu0
    %1726 = vdwg.mxu0
    %1727 = vmatprep.subr.bf16.mxu0 0
    %1728 = vmatpush1.bf16.msra.mxu0 %v1639
    %1729 = vmatprep.subr.bf16.mxu0 0
    %1730 = vmatpush1.bf16.msra.mxu0 %v1640
    %1731 = vmatprep.subr.bf16.mxu0 0
    %1732 = vmatpush1.bf16.msra.mxu0 %v1641
    %1733 = vmatprep.subr.bf16.mxu0 0
    %1734 = vmatpush1.bf16.msra.mxu0 %v1642
    %1735 = vmatprep.subr.bf16.mxu0 0
    %1736 = vmatpush1.bf16.msra.mxu0 %v1643
    %1737 = vmatprep.subr.bf16.mxu0 0
    %1738 = vmatpush1.bf16.msra.mxu0 %v1644
    %1739 = vmatprep.subr.bf16.mxu0 0
    %1740 = vmatpush1.bf16.msra.mxu0 %v1645
    %1741 = vmatprep.subr.bf16.mxu0 0
    %1742 = vmatpush1.bf16.msra.mxu0 %v1646
    %1743 = vmatprep.subr.bf16.mxu0 0
    %1744 = vmatpush1.bf16.msra.mxu0 %v1647
    %1745 = vmatprep.subr.bf16.mxu0 0
    %1746 = vmatpush1.bf16.msra.mxu0 %v1648
    %1747 = vmatprep.subr.bf16.mxu0 0
    %1748 = vmatpush1.bf16.msra.mxu0 %v1649
    %1749 = vmatprep.subr.bf16.mxu0 0
    %1750 = vmatpush1.bf16.msra.mxu0 %v1650
    %1751 = vmatprep.subr.bf16.mxu0 0
    %1752 = vmatpush1.bf16.msra.mxu0 %v1651
    %1753 = vmatprep.subr.bf16.mxu0 0
    %1754 = vmatpush1.bf16.msra.mxu0 %v1652
    %1755 = vmatprep.subr.bf16.mxu0 0
    %1756 = vmatpush1.bf16.msra.mxu0 %v1653
    %1757 = vmatprep.subr.bf16.mxu0 0
    %1758 = vmatpush1.bf16.msra.mxu0 %v1654
    %1759 = vmatprep.mubr.bf16.mxu0 %v1423
    %1760 = vmatmul.mubr.bf16.gmra.mrb[0].mxu0 %v1422
    %v1761 = vpop.f32.mrb[0].mxu0
    %v1762 = vadd.f32 %v1722, %v1761
    %v1763 = vpop.f32.mrb[0].mxu0
    %v1764 = vpop.f32.mrb[0].mxu0
    %v1765 = vpop.f32.mrb[0].mxu0
    %1766 = vdwg.mxu0
    %v1767 = vtanh.pop %v1762
    %v1768 = vld [vmem:[#allocation5] sm:$0xff]
    %v1769 = vadd.f32 %v1767, %v1768
    %1770 = vst [vmem:[#allocation17] sm:$0xff] %v1769
    %v1771 = vpack.c.bf16 %v1769, %v1769
    %v1772 = vld [vmem:[#allocation11] sm:$0xff]
    %v1773 = vld [vmem:[#allocation11 + $0x8] sm:$0xff]
    %v1774 = vld [vmem:[#allocation11 + $0x10] sm:$0xff]
    %v1775 = vld [vmem:[#allocation11 + $0x18] sm:$0xff]
    %v1776 = vld [vmem:[#allocation11 + $0x20] sm:$0xff]
    %v1777 = vld [vmem:[#allocation11 + $0x28] sm:$0xff]
    %v1778 = vld [vmem:[#allocation11 + $0x30] sm:$0xff]
    %v1779 = vld [vmem:[#allocation11 + $0x38] sm:$0xff]
    %v1780 = vld [vmem:[#allocation11 + $0x40] sm:$0xff]
    %v1781 = vld [vmem:[#allocation11 + $0x48] sm:$0xff]
    %v1782 = vld [vmem:[#allocation11 + $0x50] sm:$0xff]
    %v1783 = vld [vmem:[#allocation11 + $0x58] sm:$0xff]
    %v1784 = vld [vmem:[#allocation11 + $0x60] sm:$0xff]
    %v1785 = vld [vmem:[#allocation11 + $0x68] sm:$0xff]
    %v1786 = vld [vmem:[#allocation11 + $0x70] sm:$0xff]
    %v1787 = vld [vmem:[#allocation11 + $0x78] sm:$0xff]
    %v1788 = vld [vmem:[#allocation11 + $0x80] sm:$0xff]
    %v1789 = vld [vmem:[#allocation11 + $0x88] sm:$0xff]
    %v1790 = vld [vmem:[#allocation11 + $0x90] sm:$0xff]
    %v1791 = vld [vmem:[#allocation11 + $0x98] sm:$0xff]
    %v1792 = vld [vmem:[#allocation11 + $0xa0] sm:$0xff]
    %v1793 = vld [vmem:[#allocation11 + $0xa8] sm:$0xff]
    %v1794 = vld [vmem:[#allocation11 + $0xb0] sm:$0xff]
    %v1795 = vld [vmem:[#allocation11 + $0xb8] sm:$0xff]
    %v1796 = vld [vmem:[#allocation11 + $0xc0] sm:$0xff]
    %v1797 = vld [vmem:[#allocation11 + $0xc8] sm:$0xff]
    %v1798 = vld [vmem:[#allocation11 + $0xd0] sm:$0xff]
    %v1799 = vld [vmem:[#allocation11 + $0xd8] sm:$0xff]
    %v1800 = vld [vmem:[#allocation11 + $0xe0] sm:$0xff]
    %v1801 = vld [vmem:[#allocation11 + $0xe8] sm:$0xff]
    %v1802 = vld [vmem:[#allocation11 + $0xf0] sm:$0xff]
    %v1803 = vld [vmem:[#allocation11 + $0xf8] sm:$0xff]
    %v1804 = vld [vmem:[%s9] sm:$0xf]
    %v1806 = vlaneseq
    %v1807 = vshrl.u32 %v1806, 7
    %v1808 = vsub.s32 0, %v1807
    %v1809 = vrot.slane %v1804, %v1808
    %v1810 = vlaneseq
    %v1811 = vshrl.u32 %v1810, 7
    %v1812 = vsub.s32 1, %v1811
    %v1813 = vrot.slane %v1804, %v1812
    %v1814 = vlaneseq
    %v1815 = vshrl.u32 %v1814, 7
    %v1816 = vsub.s32 2, %v1815
    %v1817 = vrot.slane %v1804, %v1816
    %v1818 = vlaneseq
    %v1819 = vshrl.u32 %v1818, 7
    %v1820 = vsub.s32 3, %v1819
    %v1821 = vrot.slane %v1804, %v1820
    %v1858 = vunpack.c.l.b16 %v1772
    %v1859 = vunpack.c.h.b16 %v1772
    %v1860 = vunpack.c.l.b16 %v1773
    %v1861 = vunpack.c.h.b16 %v1773
    %v1862 = vunpack.c.l.b16 %v1774
    %v1863 = vunpack.c.h.b16 %v1774
    %v1864 = vunpack.c.l.b16 %v1775
    %v1865 = vunpack.c.h.b16 %v1775
    %v1866 = vunpack.c.l.b16 %v1776
    %v1867 = vunpack.c.h.b16 %v1776
    %v1868 = vunpack.c.l.b16 %v1777
    %v1869 = vunpack.c.h.b16 %v1777
    %v1870 = vunpack.c.l.b16 %v1778
    %v1871 = vunpack.c.h.b16 %v1778
    %v1872 = vunpack.c.l.b16 %v1779
    %v1873 = vunpack.c.h.b16 %v1779
    %v1874 = vunpack.c.l.b16 %v1780
    %v1875 = vunpack.c.h.b16 %v1780
    %v1876 = vunpack.c.l.b16 %v1781
    %v1877 = vunpack.c.h.b16 %v1781
    %v1878 = vunpack.c.l.b16 %v1782
    %v1879 = vunpack.c.h.b16 %v1782
    %v1880 = vunpack.c.l.b16 %v1783
    %v1881 = vunpack.c.h.b16 %v1783
    %v1882 = vunpack.c.l.b16 %v1784
    %v1883 = vunpack.c.h.b16 %v1784
    %v1884 = vunpack.c.l.b16 %v1785
    %v1885 = vunpack.c.h.b16 %v1785
    %v1886 = vunpack.c.l.b16 %v1786
    %v1887 = vunpack.c.h.b16 %v1786
    %v1888 = vunpack.c.l.b16 %v1787
    %v1889 = vunpack.c.h.b16 %v1787
    %v1890 = vunpack.c.l.b16 %v1788
    %v1891 = vunpack.c.h.b16 %v1788
    %v1892 = vunpack.c.l.b16 %v1789
    %v1893 = vunpack.c.h.b16 %v1789
    %v1894 = vunpack.c.l.b16 %v1790
    %v1895 = vunpack.c.h.b16 %v1790
    %v1896 = vunpack.c.l.b16 %v1791
    %v1897 = vunpack.c.h.b16 %v1791
    %v1898 = vunpack.c.l.b16 %v1792
    %v1899 = vunpack.c.h.b16 %v1792
    %v1900 = vunpack.c.l.b16 %v1793
    %v1901 = vunpack.c.h.b16 %v1793
    %v1902 = vunpack.c.l.b16 %v1794
    %v1903 = vunpack.c.h.b16 %v1794
    %v1904 = vunpack.c.l.b16 %v1795
    %v1905 = vunpack.c.h.b16 %v1795
    %v1906 = vunpack.c.l.b16 %v1796
    %v1907 = vunpack.c.h.b16 %v1796
    %v1908 = vunpack.c.l.b16 %v1797
    %v1909 = vunpack.c.h.b16 %v1797
    %v1910 = vunpack.c.l.b16 %v1798
    %v1911 = vunpack.c.h.b16 %v1798
    %v1912 = vunpack.c.l.b16 %v1799
    %v1913 = vunpack.c.h.b16 %v1799
    %v1914 = vunpack.c.l.b16 %v1800
    %v1915 = vunpack.c.h.b16 %v1800
    %v1916 = vunpack.c.l.b16 %v1801
    %v1917 = vunpack.c.h.b16 %v1801
    %v1918 = vunpack.c.l.b16 %v1802
    %v1919 = vunpack.c.h.b16 %v1802
    %v1920 = vunpack.c.l.b16 %v1803
    %v1921 = vunpack.c.h.b16 %v1803
    %v1922 = vpack.c.b16 %v1862, %v1858
    %v1923 = vpack.c.b16 %v1863, %v1859
    %v1924 = vpack.c.b16 %v1864, %v1860
    %v1925 = vpack.c.b16 %v1865, %v1861
    %v1926 = vpack.c.b16 %v1870, %v1866
    %v1927 = vpack.c.b16 %v1871, %v1867
    %v1928 = vpack.c.b16 %v1872, %v1868
    %v1929 = vpack.c.b16 %v1873, %v1869
    %v1930 = vpack.c.b16 %v1878, %v1874
    %v1931 = vpack.c.b16 %v1879, %v1875
    %v1932 = vpack.c.b16 %v1880, %v1876
    %v1933 = vpack.c.b16 %v1881, %v1877
    %v1934 = vpack.c.b16 %v1886, %v1882
    %v1935 = vpack.c.b16 %v1887, %v1883
    %v1936 = vpack.c.b16 %v1888, %v1884
    %v1937 = vpack.c.b16 %v1889, %v1885
    %v1938 = vpack.c.b16 %v1894, %v1890
    %v1939 = vpack.c.b16 %v1895, %v1891
    %v1940 = vpack.c.b16 %v1896, %v1892
    %v1941 = vpack.c.b16 %v1897, %v1893
    %v1942 = vpack.c.b16 %v1902, %v1898
    %v1943 = vpack.c.b16 %v1903, %v1899
    %v1944 = vpack.c.b16 %v1904, %v1900
    %v1945 = vpack.c.b16 %v1905, %v1901
    %v1946 = vpack.c.b16 %v1910, %v1906
    %v1947 = vpack.c.b16 %v1911, %v1907
    %v1948 = vpack.c.b16 %v1912, %v1908
    %v1949 = vpack.c.b16 %v1913, %v1909
    %v1950 = vpack.c.b16 %v1918, %v1914
    %v1951 = vpack.c.b16 %v1919, %v1915
    %v1952 = vpack.c.b16 %v1920, %v1916
    %v1953 = vpack.c.b16 %v1921, %v1917
    %1986 = vmatprep.subr.bf16.mxu0 %v1923
    %1987 = vmatpush1.bf16.msra.mxu0 %v1922
    %1988 = vmatprep.subr.bf16.mxu0 %v1927
    %1989 = vmatpush1.bf16.msra.mxu0 %v1926
    %1990 = vmatprep.subr.bf16.mxu0 %v1931
    %1991 = vmatpush1.bf16.msra.mxu0 %v1930
    %1992 = vmatprep.subr.bf16.mxu0 %v1935
    %1993 = vmatpush1.bf16.msra.mxu0 %v1934
    %1994 = vmatprep.subr.bf16.mxu0 %v1939
    %1995 = vmatpush1.bf16.msra.mxu0 %v1938
    %1996 = vmatprep.subr.bf16.mxu0 %v1943
    %1997 = vmatpush1.bf16.msra.mxu0 %v1942
    %1998 = vmatprep.subr.bf16.mxu0 %v1947
    %1999 = vmatpush1.bf16.msra.mxu0 %v1946
    %2000 = vmatprep.subr.bf16.mxu0 %v1951
    %2001 = vmatpush1.bf16.msra.mxu0 %v1950
    %2002 = vmatprep.subr.bf16.mxu0 0
    %2003 = vmatpush1.bf16.msra.mxu0 0
    %2004 = vmatprep.subr.bf16.mxu0 0
    %2005 = vmatpush1.bf16.msra.mxu0 0
    %2006 = vmatprep.subr.bf16.mxu0 0
    %2007 = vmatpush1.bf16.msra.mxu0 0
    %2008 = vmatprep.subr.bf16.mxu0 0
    %2009 = vmatpush1.bf16.msra.mxu0 0
    %2010 = vmatprep.subr.bf16.mxu0 0
    %2011 = vmatpush1.bf16.msra.mxu0 0
    %2012 = vmatprep.subr.bf16.mxu0 0
    %2013 = vmatpush1.bf16.msra.mxu0 0
    %2014 = vmatprep.subr.bf16.mxu0 0
    %2015 = vmatpush1.bf16.msra.mxu0 0
    %2016 = vmatprep.subr.bf16.mxu0 0
    %2017 = vmatpush1.bf16.msra.mxu0 0
    %2018 = vmatprep.mubr.bf16.mxu0 0
    %2019 = vmatmul.mubr.bf16.gmra.mrb[0].mxu0 %v1771
    %v2020 = vpop.f32.mrb[0].mxu0
    %v2021 = vadd.f32 %v1809, %v2020
    %v2022 = vpop.f32.mrb[0].mxu0
    %v2023 = vadd.f32 %v1813, %v2022
    %v2024 = vpop.f32.mrb[0].mxu0
    %v2025 = vpop.f32.mrb[0].mxu0
    %2026 = vdwg.mxu0
    %2027 = vmatprep.subr.bf16.mxu0 %v1925
    %2028 = vmatpush1.bf16.msra.mxu0 %v1924
    %2029 = vmatprep.subr.bf16.mxu0 %v1929
    %2030 = vmatpush1.bf16.msra.mxu0 %v1928
    %2031 = vmatprep.subr.bf16.mxu0 %v1933
    %2032 = vmatpush1.bf16.msra.mxu0 %v1932
    %2033 = vmatprep.subr.bf16.mxu0 %v1937
    %2034 = vmatpush1.bf16.msra.mxu0 %v1936
    %2035 = vmatprep.subr.bf16.mxu0 %v1941
    %2036 = vmatpush1.bf16.msra.mxu0 %v1940
    %2037 = vmatprep.subr.bf16.mxu0 %v1945
    %2038 = vmatpush1.bf16.msra.mxu0 %v1944
    %2039 = vmatprep.subr.bf16.mxu0 %v1949
    %2040 = vmatpush1.bf16.msra.mxu0 %v1948
    %2041 = vmatprep.subr.bf16.mxu0 %v1953
    %2042 = vmatpush1.bf16.msra.mxu0 %v1952
    %2043 = vmatprep.subr.bf16.mxu0 0
    %2044 = vmatpush1.bf16.msra.mxu0 0
    %2045 = vmatprep.subr.bf16.mxu0 0
    %2046 = vmatpush1.bf16.msra.mxu0 0
    %2047 = vmatprep.subr.bf16.mxu0 0
    %2048 = vmatpush1.bf16.msra.mxu0 0
    %2049 = vmatprep.subr.bf16.mxu0 0
    %2050 = vmatpush1.bf16.msra.mxu0 0
    %2051 = vmatprep.subr.bf16.mxu0 0
    %2052 = vmatpush1.bf16.msra.mxu0 0
    %2053 = vmatprep.subr.bf16.mxu0 0
    %2054 = vmatpush1.bf16.msra.mxu0 0
    %2055 = vmatprep.subr.bf16.mxu0 0
    %2056 = vmatpush1.bf16.msra.mxu0 0
    %2057 = vmatprep.subr.bf16.mxu0 0
    %2058 = vmatpush1.bf16.msra.mxu0 0
    %2059 = vmatprep.mubr.bf16.mxu0 0
    %2060 = vmatmul.mubr.bf16.gmra.mrb[0].mxu0 %v1771
    %v2061 = vpop.f32.mrb[0].mxu0
    %v2062 = vadd.f32 %v1817, %v2061
    %v2063 = vpop.f32.mrb[0].mxu0
    %v2064 = vadd.f32 %v1821, %v2063
    %v2065 = vpop.f32.mrb[0].mxu0
    %v2066 = vpop.f32.mrb[0].mxu0
    %2067 = vdwg.mxu0
    %v2068 = vmax.f32 %v2021, 0.0
    %v2069 = vmax.f32 %v2023, 0.0
    %v2070 = vmax.f32 %v2062, 0.0
    %v2071 = vmax.f32 %v2064, 0.0
    %v2072 = vpack.c.bf16 %v2068, %v2068
    %v2073 = vpack.c.bf16 %v2069, %v2069
    %v2074 = vpack.c.bf16 %v2070, %v2070
    %v2075 = vpack.c.bf16 %v2071, %v2071
    %v2076 = vld [vmem:[#allocation13] sm:$0xff]
    %v2077 = vld [vmem:[#allocation13 + $0x8] sm:$0xff]
    %v2078 = vld [vmem:[#allocation13 + $0x10] sm:$0xff]
    %v2079 = vld [vmem:[#allocation13 + $0x18] sm:$0xff]
    %v2080 = vld [vmem:[#allocation13 + $0x20] sm:$0xff]
    %v2081 = vld [vmem:[#allocation13 + $0x28] sm:$0xff]
    %v2082 = vld [vmem:[#allocation13 + $0x30] sm:$0xff]
    %v2083 = vld [vmem:[#allocation13 + $0x38] sm:$0xff]
    %v2084 = vld [vmem:[#allocation13 + $0x40] sm:$0xff]
    %v2085 = vld [vmem:[#allocation13 + $0x48] sm:$0xff]
    %v2086 = vld [vmem:[#allocation13 + $0x50] sm:$0xff]
    %v2087 = vld [vmem:[#allocation13 + $0x58] sm:$0xff]
    %v2088 = vld [vmem:[#allocation13 + $0x60] sm:$0xff]
    %v2089 = vld [vmem:[#allocation13 + $0x68] sm:$0xff]
    %v2090 = vld [vmem:[#allocation13 + $0x70] sm:$0xff]
    %v2091 = vld [vmem:[#allocation13 + $0x78] sm:$0xff]
    %v2092 = vld [vmem:[#allocation13 + $0x80] sm:$0xff]
    %v2093 = vld [vmem:[#allocation13 + $0x88] sm:$0xff]
    %v2094 = vld [vmem:[#allocation13 + $0x90] sm:$0xff]
    %v2095 = vld [vmem:[#allocation13 + $0x98] sm:$0xff]
    %v2096 = vld [vmem:[#allocation13 + $0xa0] sm:$0xff]
    %v2097 = vld [vmem:[#allocation13 + $0xa8] sm:$0xff]
    %v2098 = vld [vmem:[#allocation13 + $0xb0] sm:$0xff]
    %v2099 = vld [vmem:[#allocation13 + $0xb8] sm:$0xff]
    %v2100 = vld [vmem:[#allocation13 + $0xc0] sm:$0xff]
    %v2101 = vld [vmem:[#allocation13 + $0xc8] sm:$0xff]
    %v2102 = vld [vmem:[#allocation13 + $0xd0] sm:$0xff]
    %v2103 = vld [vmem:[#allocation13 + $0xd8] sm:$0xff]
    %v2104 = vld [vmem:[#allocation13 + $0xe0] sm:$0xff]
    %v2105 = vld [vmem:[#allocation13 + $0xe8] sm:$0xff]
    %v2106 = vld [vmem:[#allocation13 + $0xf0] sm:$0xff]
    %v2107 = vld [vmem:[#allocation13 + $0xf8] sm:$0xff]
    %v2108 = vld [vmem:[#allocation13 + $0x100] sm:$0xff]
    %v2109 = vld [vmem:[#allocation13 + $0x108] sm:$0xff]
    %v2110 = vld [vmem:[#allocation13 + $0x110] sm:$0xff]
    %v2111 = vld [vmem:[#allocation13 + $0x118] sm:$0xff]
    %v2112 = vld [vmem:[#allocation13 + $0x120] sm:$0xff]
    %v2113 = vld [vmem:[#allocation13 + $0x128] sm:$0xff]
    %v2114 = vld [vmem:[#allocation13 + $0x130] sm:$0xff]
    %v2115 = vld [vmem:[#allocation13 + $0x138] sm:$0xff]
    %v2116 = vld [vmem:[#allocation13 + $0x140] sm:$0xff]
    %v2117 = vld [vmem:[#allocation13 + $0x148] sm:$0xff]
    %v2118 = vld [vmem:[#allocation13 + $0x150] sm:$0xff]
    %v2119 = vld [vmem:[#allocation13 + $0x158] sm:$0xff]
    %v2120 = vld [vmem:[#allocation13 + $0x160] sm:$0xff]
    %v2121 = vld [vmem:[#allocation13 + $0x168] sm:$0xff]
    %v2122 = vld [vmem:[#allocation13 + $0x170] sm:$0xff]
    %v2123 = vld [vmem:[#allocation13 + $0x178] sm:$0xff]
    %v2124 = vld [vmem:[#allocation13 + $0x180] sm:$0xff]
    %v2125 = vld [vmem:[#allocation13 + $0x188] sm:$0xff]
    %v2126 = vld [vmem:[#allocation13 + $0x190] sm:$0xff]
    %v2127 = vld [vmem:[#allocation13 + $0x198] sm:$0xff]
    %v2128 = vld [vmem:[#allocation13 + $0x1a0] sm:$0xff]
    %v2129 = vld [vmem:[#allocation13 + $0x1a8] sm:$0xff]
    %v2130 = vld [vmem:[#allocation13 + $0x1b0] sm:$0xff]
    %v2131 = vld [vmem:[#allocation13 + $0x1b8] sm:$0xff]
    %v2132 = vld [vmem:[#allocation13 + $0x1c0] sm:$0xff]
    %v2133 = vld [vmem:[#allocation13 + $0x1c8] sm:$0xff]
    %v2134 = vld [vmem:[#allocation13 + $0x1d0] sm:$0xff]
    %v2135 = vld [vmem:[#allocation13 + $0x1d8] sm:$0xff]
    %v2136 = vld [vmem:[#allocation13 + $0x1e0] sm:$0xff]
    %v2137 = vld [vmem:[#allocation13 + $0x1e8] sm:$0xff]
    %v2138 = vld [vmem:[#allocation13 + $0x1f0] sm:$0xff]
    %v2139 = vld [vmem:[#allocation13 + $0x1f8] sm:$0xff]
    %v2140 = vld [vmem:[#allocation13 + $0x200] sm:$0xff]
    %v2141 = vld [vmem:[#allocation13 + $0x208] sm:$0xff]
    %v2142 = vld [vmem:[#allocation13 + $0x210] sm:$0xff]
    %v2143 = vld [vmem:[#allocation13 + $0x218] sm:$0xff]
    %v2144 = vld [vmem:[#allocation13 + $0x220] sm:$0xff]
    %v2145 = vld [vmem:[#allocation13 + $0x228] sm:$0xff]
    %v2146 = vld [vmem:[#allocation13 + $0x230] sm:$0xff]
    %v2147 = vld [vmem:[#allocation13 + $0x238] sm:$0xff]
    %v2148 = vld [vmem:[#allocation13 + $0x240] sm:$0xff]
    %v2149 = vld [vmem:[#allocation13 + $0x248] sm:$0xff]
    %v2150 = vld [vmem:[#allocation13 + $0x250] sm:$0xff]
    %v2151 = vld [vmem:[#allocation13 + $0x258] sm:$0xff]
    %v2152 = vld [vmem:[#allocation13 + $0x260] sm:$0xff]
    %v2153 = vld [vmem:[#allocation13 + $0x268] sm:$0xff]
    %v2154 = vld [vmem:[#allocation13 + $0x270] sm:$0xff]
    %v2155 = vld [vmem:[#allocation13 + $0x278] sm:$0xff]
    %v2156 = vld [vmem:[#allocation13 + $0x280] sm:$0xff]
    %v2157 = vld [vmem:[#allocation13 + $0x288] sm:$0xff]
    %v2158 = vld [vmem:[#allocation13 + $0x290] sm:$0xff]
    %v2159 = vld [vmem:[#allocation13 + $0x298] sm:$0xff]
    %v2160 = vld [vmem:[#allocation13 + $0x2a0] sm:$0xff]
    %v2161 = vld [vmem:[#allocation13 + $0x2a8] sm:$0xff]
    %v2162 = vld [vmem:[#allocation13 + $0x2b0] sm:$0xff]
    %v2163 = vld [vmem:[#allocation13 + $0x2b8] sm:$0xff]
    %v2164 = vld [vmem:[#allocation13 + $0x2c0] sm:$0xff]
    %v2165 = vld [vmem:[#allocation13 + $0x2c8] sm:$0xff]
    %v2166 = vld [vmem:[#allocation13 + $0x2d0] sm:$0xff]
    %v2167 = vld [vmem:[#allocation13 + $0x2d8] sm:$0xff]
    %v2168 = vld [vmem:[#allocation13 + $0x2e0] sm:$0xff]
    %v2169 = vld [vmem:[#allocation13 + $0x2e8] sm:$0xff]
    %v2170 = vld [vmem:[#allocation13 + $0x2f0] sm:$0xff]
    %v2171 = vld [vmem:[#allocation13 + $0x2f8] sm:$0xff]
    %v2172 = vld [vmem:[#allocation13 + $0x300] sm:$0xff]
    %v2173 = vld [vmem:[#allocation13 + $0x308] sm:$0xff]
    %v2174 = vld [vmem:[#allocation13 + $0x310] sm:$0xff]
    %v2175 = vld [vmem:[#allocation13 + $0x318] sm:$0xff]
    %v2176 = vld [vmem:[#allocation13 + $0x320] sm:$0xff]
    %v2177 = vld [vmem:[#allocation13 + $0x328] sm:$0xff]
    %v2178 = vld [vmem:[#allocation13 + $0x330] sm:$0xff]
    %v2179 = vld [vmem:[#allocation13 + $0x338] sm:$0xff]
    %v2180 = vld [vmem:[#allocation13 + $0x340] sm:$0xff]
    %v2181 = vld [vmem:[#allocation13 + $0x348] sm:$0xff]
    %v2182 = vld [vmem:[#allocation13 + $0x350] sm:$0xff]
    %v2183 = vld [vmem:[#allocation13 + $0x358] sm:$0xff]
    %v2184 = vld [vmem:[#allocation13 + $0x360] sm:$0xff]
    %v2185 = vld [vmem:[#allocation13 + $0x368] sm:$0xff]
    %v2186 = vld [vmem:[#allocation13 + $0x370] sm:$0xff]
    %v2187 = vld [vmem:[#allocation13 + $0x378] sm:$0xff]
    %v2188 = vld [vmem:[#allocation13 + $0x380] sm:$0xff]
    %v2189 = vld [vmem:[#allocation13 + $0x388] sm:$0xff]
    %v2190 = vld [vmem:[#allocation13 + $0x390] sm:$0xff]
    %v2191 = vld [vmem:[#allocation13 + $0x398] sm:$0xff]
    %v2192 = vld [vmem:[#allocation13 + $0x3a0] sm:$0xff]
    %v2193 = vld [vmem:[#allocation13 + $0x3a8] sm:$0xff]
    %v2194 = vld [vmem:[#allocation13 + $0x3b0] sm:$0xff]
    %v2195 = vld [vmem:[#allocation13 + $0x3b8] sm:$0xff]
    %v2196 = vld [vmem:[#allocation13 + $0x3c0] sm:$0xff]
    %v2197 = vld [vmem:[#allocation13 + $0x3c8] sm:$0xff]
    %v2198 = vld [vmem:[#allocation13 + $0x3d0] sm:$0xff]
    %v2199 = vld [vmem:[#allocation13 + $0x3d8] sm:$0xff]
    %v2200 = vld [vmem:[#allocation13 + $0x3e0] sm:$0xff]
    %v2201 = vld [vmem:[#allocation13 + $0x3e8] sm:$0xff]
    %v2202 = vld [vmem:[#allocation13 + $0x3f0] sm:$0xff]
    %v2203 = vld [vmem:[#allocation13 + $0x3f8] sm:$0xff]
    %v2204 = vld [vmem:[%s11] sm:$0xf]
    %v2206 = vlaneseq
    %v2207 = vshrl.u32 %v2206, 7
    %v2208 = vsub.s32 0, %v2207
    %v2209 = vrot.slane %v2204, %v2208
    %v2210 = vlaneseq
    %v2211 = vshrl.u32 %v2210, 7
    %v2212 = vsub.s32 1, %v2211
    %v2213 = vrot.slane %v2204, %v2212
    %v2214 = vlaneseq
    %v2215 = vshrl.u32 %v2214, 7
    %v2216 = vsub.s32 2, %v2215
    %v2217 = vrot.slane %v2204, %v2216
    %v2218 = vlaneseq
    %v2219 = vshrl.u32 %v2218, 7
    %v2220 = vsub.s32 3, %v2219
    %v2221 = vrot.slane %v2204, %v2220
    %v2354 = vunpack.c.l.b16 %v2076
    %v2355 = vunpack.c.h.b16 %v2076
    %v2356 = vunpack.c.l.b16 %v2077
    %v2357 = vunpack.c.h.b16 %v2077
    %v2358 = vunpack.c.l.b16 %v2078
    %v2359 = vunpack.c.h.b16 %v2078
    %v2360 = vunpack.c.l.b16 %v2079
    %v2361 = vunpack.c.h.b16 %v2079
    %v2362 = vunpack.c.l.b16 %v2080
    %v2363 = vunpack.c.h.b16 %v2080
    %v2364 = vunpack.c.l.b16 %v2081
    %v2365 = vunpack.c.h.b16 %v2081
    %v2366 = vunpack.c.l.b16 %v2082
    %v2367 = vunpack.c.h.b16 %v2082
    %v2368 = vunpack.c.l.b16 %v2083
    %v2369 = vunpack.c.h.b16 %v2083
    %v2370 = vunpack.c.l.b16 %v2084
    %v2371 = vunpack.c.h.b16 %v2084
    %v2372 = vunpack.c.l.b16 %v2085
    %v2373 = vunpack.c.h.b16 %v2085
    %v2374 = vunpack.c.l.b16 %v2086
    %v2375 = vunpack.c.h.b16 %v2086
    %v2376 = vunpack.c.l.b16 %v2087
    %v2377 = vunpack.c.h.b16 %v2087
    %v2378 = vunpack.c.l.b16 %v2088
    %v2379 = vunpack.c.h.b16 %v2088
    %v2380 = vunpack.c.l.b16 %v2089
    %v2381 = vunpack.c.h.b16 %v2089
    %v2382 = vunpack.c.l.b16 %v2090
    %v2383 = vunpack.c.h.b16 %v2090
    %v2384 = vunpack.c.l.b16 %v2091
    %v2385 = vunpack.c.h.b16 %v2091
    %v2386 = vunpack.c.l.b16 %v2092
    %v2387 = vunpack.c.h.b16 %v2092
    %v2388 = vunpack.c.l.b16 %v2093
    %v2389 = vunpack.c.h.b16 %v2093
    %v2390 = vunpack.c.l.b16 %v2094
    %v2391 = vunpack.c.h.b16 %v2094
    %v2392 = vunpack.c.l.b16 %v2095
    %v2393 = vunpack.c.h.b16 %v2095
    %v2394 = vunpack.c.l.b16 %v2096
    %v2395 = vunpack.c.h.b16 %v2096
    %v2396 = vunpack.c.l.b16 %v2097
    %v2397 = vunpack.c.h.b16 %v2097
    %v2398 = vunpack.c.l.b16 %v2098
    %v2399 = vunpack.c.h.b16 %v2098
    %v2400 = vunpack.c.l.b16 %v2099
    %v2401 = vunpack.c.h.b16 %v2099
    %v2402 = vunpack.c.l.b16 %v2100
    %v2403 = vunpack.c.h.b16 %v2100
    %v2404 = vunpack.c.l.b16 %v2101
    %v2405 = vunpack.c.h.b16 %v2101
    %v2406 = vunpack.c.l.b16 %v2102
    %v2407 = vunpack.c.h.b16 %v2102
    %v2408 = vunpack.c.l.b16 %v2103
    %v2409 = vunpack.c.h.b16 %v2103
    %v2410 = vunpack.c.l.b16 %v2104
    %v2411 = vunpack.c.h.b16 %v2104
    %v2412 = vunpack.c.l.b16 %v2105
    %v2413 = vunpack.c.h.b16 %v2105
    %v2414 = vunpack.c.l.b16 %v2106
    %v2415 = vunpack.c.h.b16 %v2106
    %v2416 = vunpack.c.l.b16 %v2107
    %v2417 = vunpack.c.h.b16 %v2107
    %v2418 = vunpack.c.l.b16 %v2108
    %v2419 = vunpack.c.h.b16 %v2108
    %v2420 = vunpack.c.l.b16 %v2109
    %v2421 = vunpack.c.h.b16 %v2109
    %v2422 = vunpack.c.l.b16 %v2110
    %v2423 = vunpack.c.h.b16 %v2110
    %v2424 = vunpack.c.l.b16 %v2111
    %v2425 = vunpack.c.h.b16 %v2111
    %v2426 = vunpack.c.l.b16 %v2112
    %v2427 = vunpack.c.h.b16 %v2112
    %v2428 = vunpack.c.l.b16 %v2113
    %v2429 = vunpack.c.h.b16 %v2113
    %v2430 = vunpack.c.l.b16 %v2114
    %v2431 = vunpack.c.h.b16 %v2114
    %v2432 = vunpack.c.l.b16 %v2115
    %v2433 = vunpack.c.h.b16 %v2115
    %v2434 = vunpack.c.l.b16 %v2116
    %v2435 = vunpack.c.h.b16 %v2116
    %v2436 = vunpack.c.l.b16 %v2117
    %v2437 = vunpack.c.h.b16 %v2117
    %v2438 = vunpack.c.l.b16 %v2118
    %v2439 = vunpack.c.h.b16 %v2118
    %v2440 = vunpack.c.l.b16 %v2119
    %v2441 = vunpack.c.h.b16 %v2119
    %v2442 = vunpack.c.l.b16 %v2120
    %v2443 = vunpack.c.h.b16 %v2120
    %v2444 = vunpack.c.l.b16 %v2121
    %v2445 = vunpack.c.h.b16 %v2121
    %v2446 = vunpack.c.l.b16 %v2122
    %v2447 = vunpack.c.h.b16 %v2122
    %v2448 = vunpack.c.l.b16 %v2123
    %v2449 = vunpack.c.h.b16 %v2123
    %v2450 = vunpack.c.l.b16 %v2124
    %v2451 = vunpack.c.h.b16 %v2124
    %v2452 = vunpack.c.l.b16 %v2125
    %v2453 = vunpack.c.h.b16 %v2125
    %v2454 = vunpack.c.l.b16 %v2126
    %v2455 = vunpack.c.h.b16 %v2126
    %v2456 = vunpack.c.l.b16 %v2127
    %v2457 = vunpack.c.h.b16 %v2127
    %v2458 = vunpack.c.l.b16 %v2128
    %v2459 = vunpack.c.h.b16 %v2128
    %v2460 = vunpack.c.l.b16 %v2129
    %v2461 = vunpack.c.h.b16 %v2129
    %v2462 = vunpack.c.l.b16 %v2130
    %v2463 = vunpack.c.h.b16 %v2130
    %v2464 = vunpack.c.l.b16 %v2131
    %v2465 = vunpack.c.h.b16 %v2131
    %v2466 = vunpack.c.l.b16 %v2132
    %v2467 = vunpack.c.h.b16 %v2132
    %v2468 = vunpack.c.l.b16 %v2133
    %v2469 = vunpack.c.h.b16 %v2133
    %v2470 = vunpack.c.l.b16 %v2134
    %v2471 = vunpack.c.h.b16 %v2134
    %v2472 = vunpack.c.l.b16 %v2135
    %v2473 = vunpack.c.h.b16 %v2135
    %v2474 = vunpack.c.l.b16 %v2136
    %v2475 = vunpack.c.h.b16 %v2136
    %v2476 = vunpack.c.l.b16 %v2137
    %v2477 = vunpack.c.h.b16 %v2137
    %v2478 = vunpack.c.l.b16 %v2138
    %v2479 = vunpack.c.h.b16 %v2138
    %v2480 = vunpack.c.l.b16 %v2139
    %v2481 = vunpack.c.h.b16 %v2139
    %v2482 = vunpack.c.l.b16 %v2140
    %v2483 = vunpack.c.h.b16 %v2140
    %v2484 = vunpack.c.l.b16 %v2141
    %v2485 = vunpack.c.h.b16 %v2141
    %v2486 = vunpack.c.l.b16 %v2142
    %v2487 = vunpack.c.h.b16 %v2142
    %v2488 = vunpack.c.l.b16 %v2143
    %v2489 = vunpack.c.h.b16 %v2143
    %v2490 = vunpack.c.l.b16 %v2144
    %v2491 = vunpack.c.h.b16 %v2144
    %v2492 = vunpack.c.l.b16 %v2145
    %v2493 = vunpack.c.h.b16 %v2145
    %v2494 = vunpack.c.l.b16 %v2146
    %v2495 = vunpack.c.h.b16 %v2146
    %v2496 = vunpack.c.l.b16 %v2147
    %v2497 = vunpack.c.h.b16 %v2147
    %v2498 = vunpack.c.l.b16 %v2148
    %v2499 = vunpack.c.h.b16 %v2148
    %v2500 = vunpack.c.l.b16 %v2149
    %v2501 = vunpack.c.h.b16 %v2149
    %v2502 = vunpack.c.l.b16 %v2150
    %v2503 = vunpack.c.h.b16 %v2150
    %v2504 = vunpack.c.l.b16 %v2151
    %v2505 = vunpack.c.h.b16 %v2151
    %v2506 = vunpack.c.l.b16 %v2152
    %v2507 = vunpack.c.h.b16 %v2152
    %v2508 = vunpack.c.l.b16 %v2153
    %v2509 = vunpack.c.h.b16 %v2153
    %v2510 = vunpack.c.l.b16 %v2154
    %v2511 = vunpack.c.h.b16 %v2154
    %v2512 = vunpack.c.l.b16 %v2155
    %v2513 = vunpack.c.h.b16 %v2155
    %v2514 = vunpack.c.l.b16 %v2156
    %v2515 = vunpack.c.h.b16 %v2156
    %v2516 = vunpack.c.l.b16 %v2157
    %v2517 = vunpack.c.h.b16 %v2157
    %v2518 = vunpack.c.l.b16 %v2158
    %v2519 = vunpack.c.h.b16 %v2158
    %v2520 = vunpack.c.l.b16 %v2159
    %v2521 = vunpack.c.h.b16 %v2159
    %v2522 = vunpack.c.l.b16 %v2160
    %v2523 = vunpack.c.h.b16 %v2160
    %v2524 = vunpack.c.l.b16 %v2161
    %v2525 = vunpack.c.h.b16 %v2161
    %v2526 = vunpack.c.l.b16 %v2162
    %v2527 = vunpack.c.h.b16 %v2162
    %v2528 = vunpack.c.l.b16 %v2163
    %v2529 = vunpack.c.h.b16 %v2163
    %v2530 = vunpack.c.l.b16 %v2164
    %v2531 = vunpack.c.h.b16 %v2164
    %v2532 = vunpack.c.l.b16 %v2165
    %v2533 = vunpack.c.h.b16 %v2165
    %v2534 = vunpack.c.l.b16 %v2166
    %v2535 = vunpack.c.h.b16 %v2166
    %v2536 = vunpack.c.l.b16 %v2167
    %v2537 = vunpack.c.h.b16 %v2167
    %v2538 = vunpack.c.l.b16 %v2168
    %v2539 = vunpack.c.h.b16 %v2168
    %v2540 = vunpack.c.l.b16 %v2169
    %v2541 = vunpack.c.h.b16 %v2169
    %v2542 = vunpack.c.l.b16 %v2170
    %v2543 = vunpack.c.h.b16 %v2170
    %v2544 = vunpack.c.l.b16 %v2171
    %v2545 = vunpack.c.h.b16 %v2171
    %v2546 = vunpack.c.l.b16 %v2172
    %v2547 = vunpack.c.h.b16 %v2172
    %v2548 = vunpack.c.l.b16 %v2173
    %v2549 = vunpack.c.h.b16 %v2173
    %v2550 = vunpack.c.l.b16 %v2174
    %v2551 = vunpack.c.h.b16 %v2174
    %v2552 = vunpack.c.l.b16 %v2175
    %v2553 = vunpack.c.h.b16 %v2175
    %v2554 = vunpack.c.l.b16 %v2176
    %v2555 = vunpack.c.h.b16 %v2176
    %v2556 = vunpack.c.l.b16 %v2177
    %v2557 = vunpack.c.h.b16 %v2177
    %v2558 = vunpack.c.l.b16 %v2178
    %v2559 = vunpack.c.h.b16 %v2178
    %v2560 = vunpack.c.l.b16 %v2179
    %v2561 = vunpack.c.h.b16 %v2179
    %v2562 = vunpack.c.l.b16 %v2180
    %v2563 = vunpack.c.h.b16 %v2180
    %v2564 = vunpack.c.l.b16 %v2181
    %v2565 = vunpack.c.h.b16 %v2181
    %v2566 = vunpack.c.l.b16 %v2182
    %v2567 = vunpack.c.h.b16 %v2182
    %v2568 = vunpack.c.l.b16 %v2183
    %v2569 = vunpack.c.h.b16 %v2183
    %v2570 = vunpack.c.l.b16 %v2184
    %v2571 = vunpack.c.h.b16 %v2184
    %v2572 = vunpack.c.l.b16 %v2185
    %v2573 = vunpack.c.h.b16 %v2185
    %v2574 = vunpack.c.l.b16 %v2186
    %v2575 = vunpack.c.h.b16 %v2186
    %v2576 = vunpack.c.l.b16 %v2187
    %v2577 = vunpack.c.h.b16 %v2187
    %v2578 = vunpack.c.l.b16 %v2188
    %v2579 = vunpack.c.h.b16 %v2188
    %v2580 = vunpack.c.l.b16 %v2189
    %v2581 = vunpack.c.h.b16 %v2189
    %v2582 = vunpack.c.l.b16 %v2190
    %v2583 = vunpack.c.h.b16 %v2190
    %v2584 = vunpack.c.l.b16 %v2191
    %v2585 = vunpack.c.h.b16 %v2191
    %v2586 = vunpack.c.l.b16 %v2192
    %v2587 = vunpack.c.h.b16 %v2192
    %v2588 = vunpack.c.l.b16 %v2193
    %v2589 = vunpack.c.h.b16 %v2193
    %v2590 = vunpack.c.l.b16 %v2194
    %v2591 = vunpack.c.h.b16 %v2194
    %v2592 = vunpack.c.l.b16 %v2195
    %v2593 = vunpack.c.h.b16 %v2195
    %v2594 = vunpack.c.l.b16 %v2196
    %v2595 = vunpack.c.h.b16 %v2196
    %v2596 = vunpack.c.l.b16 %v2197
    %v2597 = vunpack.c.h.b16 %v2197
    %v2598 = vunpack.c.l.b16 %v2198
    %v2599 = vunpack.c.h.b16 %v2198
    %v2600 = vunpack.c.l.b16 %v2199
    %v2601 = vunpack.c.h.b16 %v2199
    %v2602 = vunpack.c.l.b16 %v2200
    %v2603 = vunpack.c.h.b16 %v2200
    %v2604 = vunpack.c.l.b16 %v2201
    %v2605 = vunpack.c.h.b16 %v2201
    %v2606 = vunpack.c.l.b16 %v2202
    %v2607 = vunpack.c.h.b16 %v2202
    %v2608 = vunpack.c.l.b16 %v2203
    %v2609 = vunpack.c.h.b16 %v2203
    %v2610 = vpack.c.b16 %v2358, %v2354
    %v2611 = vpack.c.b16 %v2359, %v2355
    %v2612 = vpack.c.b16 %v2360, %v2356
    %v2613 = vpack.c.b16 %v2361, %v2357
    %v2614 = vpack.c.b16 %v2366, %v2362
    %v2615 = vpack.c.b16 %v2367, %v2363
    %v2616 = vpack.c.b16 %v2368, %v2364
    %v2617 = vpack.c.b16 %v2369, %v2365
    %v2618 = vpack.c.b16 %v2374, %v2370
    %v2619 = vpack.c.b16 %v2375, %v2371
    %v2620 = vpack.c.b16 %v2376, %v2372
    %v2621 = vpack.c.b16 %v2377, %v2373
    %v2622 = vpack.c.b16 %v2382, %v2378
    %v2623 = vpack.c.b16 %v2383, %v2379
    %v2624 = vpack.c.b16 %v2384, %v2380
    %v2625 = vpack.c.b16 %v2385, %v2381
    %v2626 = vpack.c.b16 %v2390, %v2386
    %v2627 = vpack.c.b16 %v2391, %v2387
    %v2628 = vpack.c.b16 %v2392, %v2388
    %v2629 = vpack.c.b16 %v2393, %v2389
    %v2630 = vpack.c.b16 %v2398, %v2394
    %v2631 = vpack.c.b16 %v2399, %v2395
    %v2632 = vpack.c.b16 %v2400, %v2396
    %v2633 = vpack.c.b16 %v2401, %v2397
    %v2634 = vpack.c.b16 %v2406, %v2402
    %v2635 = vpack.c.b16 %v2407, %v2403
    %v2636 = vpack.c.b16 %v2408, %v2404
    %v2637 = vpack.c.b16 %v2409, %v2405
    %v2638 = vpack.c.b16 %v2414, %v2410
    %v2639 = vpack.c.b16 %v2415, %v2411
    %v2640 = vpack.c.b16 %v2416, %v2412
    %v2641 = vpack.c.b16 %v2417, %v2413
    %v2642 = vpack.c.b16 %v2422, %v2418
    %v2643 = vpack.c.b16 %v2423, %v2419
    %v2644 = vpack.c.b16 %v2424, %v2420
    %v2645 = vpack.c.b16 %v2425, %v2421
    %v2646 = vpack.c.b16 %v2430, %v2426
    %v2647 = vpack.c.b16 %v2431, %v2427
    %v2648 = vpack.c.b16 %v2432, %v2428
    %v2649 = vpack.c.b16 %v2433, %v2429
    %v2650 = vpack.c.b16 %v2438, %v2434
    %v2651 = vpack.c.b16 %v2439, %v2435
    %v2652 = vpack.c.b16 %v2440, %v2436
    %v2653 = vpack.c.b16 %v2441, %v2437
    %v2654 = vpack.c.b16 %v2446, %v2442
    %v2655 = vpack.c.b16 %v2447, %v2443
    %v2656 = vpack.c.b16 %v2448, %v2444
    %v2657 = vpack.c.b16 %v2449, %v2445
    %v2658 = vpack.c.b16 %v2454, %v2450
    %v2659 = vpack.c.b16 %v2455, %v2451
    %v2660 = vpack.c.b16 %v2456, %v2452
    %v2661 = vpack.c.b16 %v2457, %v2453
    %v2662 = vpack.c.b16 %v2462, %v2458
    %v2663 = vpack.c.b16 %v2463, %v2459
    %v2664 = vpack.c.b16 %v2464, %v2460
    %v2665 = vpack.c.b16 %v2465, %v2461
    %v2666 = vpack.c.b16 %v2470, %v2466
    %v2667 = vpack.c.b16 %v2471, %v2467
    %v2668 = vpack.c.b16 %v2472, %v2468
    %v2669 = vpack.c.b16 %v2473, %v2469
    %v2670 = vpack.c.b16 %v2478, %v2474
    %v2671 = vpack.c.b16 %v2479, %v2475
    %v2672 = vpack.c.b16 %v2480, %v2476
    %v2673 = vpack.c.b16 %v2481, %v2477
    %v2674 = vpack.c.b16 %v2486, %v2482
    %v2675 = vpack.c.b16 %v2487, %v2483
    %v2676 = vpack.c.b16 %v2488, %v2484
    %v2677 = vpack.c.b16 %v2489, %v2485
    %v2678 = vpack.c.b16 %v2494, %v2490
    %v2679 = vpack.c.b16 %v2495, %v2491
    %v2680 = vpack.c.b16 %v2496, %v2492
    %v2681 = vpack.c.b16 %v2497, %v2493
    %v2682 = vpack.c.b16 %v2502, %v2498
    %v2683 = vpack.c.b16 %v2503, %v2499
    %v2684 = vpack.c.b16 %v2504, %v2500
    %v2685 = vpack.c.b16 %v2505, %v2501
    %v2686 = vpack.c.b16 %v2510, %v2506
    %v2687 = vpack.c.b16 %v2511, %v2507
    %v2688 = vpack.c.b16 %v2512, %v2508
    %v2689 = vpack.c.b16 %v2513, %v2509
    %v2690 = vpack.c.b16 %v2518, %v2514
    %v2691 = vpack.c.b16 %v2519, %v2515
    %v2692 = vpack.c.b16 %v2520, %v2516
    %v2693 = vpack.c.b16 %v2521, %v2517
    %v2694 = vpack.c.b16 %v2526, %v2522
    %v2695 = vpack.c.b16 %v2527, %v2523
    %v2696 = vpack.c.b16 %v2528, %v2524
    %v2697 = vpack.c.b16 %v2529, %v2525
    %v2698 = vpack.c.b16 %v2534, %v2530
    %v2699 = vpack.c.b16 %v2535, %v2531
    %v2700 = vpack.c.b16 %v2536, %v2532
    %v2701 = vpack.c.b16 %v2537, %v2533
    %v2702 = vpack.c.b16 %v2542, %v2538
    %v2703 = vpack.c.b16 %v2543, %v2539
    %v2704 = vpack.c.b16 %v2544, %v2540
    %v2705 = vpack.c.b16 %v2545, %v2541
    %v2706 = vpack.c.b16 %v2550, %v2546
    %v2707 = vpack.c.b16 %v2551, %v2547
    %v2708 = vpack.c.b16 %v2552, %v2548
    %v2709 = vpack.c.b16 %v2553, %v2549
    %v2710 = vpack.c.b16 %v2558, %v2554
    %v2711 = vpack.c.b16 %v2559, %v2555
    %v2712 = vpack.c.b16 %v2560, %v2556
    %v2713 = vpack.c.b16 %v2561, %v2557
    %v2714 = vpack.c.b16 %v2566, %v2562
    %v2715 = vpack.c.b16 %v2567, %v2563
    %v2716 = vpack.c.b16 %v2568, %v2564
    %v2717 = vpack.c.b16 %v2569, %v2565
    %v2718 = vpack.c.b16 %v2574, %v2570
    %v2719 = vpack.c.b16 %v2575, %v2571
    %v2720 = vpack.c.b16 %v2576, %v2572
    %v2721 = vpack.c.b16 %v2577, %v2573
    %v2722 = vpack.c.b16 %v2582, %v2578
    %v2723 = vpack.c.b16 %v2583, %v2579
    %v2724 = vpack.c.b16 %v2584, %v2580
    %v2725 = vpack.c.b16 %v2585, %v2581
    %v2726 = vpack.c.b16 %v2590, %v2586
    %v2727 = vpack.c.b16 %v2591, %v2587
    %v2728 = vpack.c.b16 %v2592, %v2588
    %v2729 = vpack.c.b16 %v2593, %v2589
    %v2730 = vpack.c.b16 %v2598, %v2594
    %v2731 = vpack.c.b16 %v2599, %v2595
    %v2732 = vpack.c.b16 %v2600, %v2596
    %v2733 = vpack.c.b16 %v2601, %v2597
    %v2734 = vpack.c.b16 %v2606, %v2602
    %v2735 = vpack.c.b16 %v2607, %v2603
    %v2736 = vpack.c.b16 %v2608, %v2604
    %v2737 = vpack.c.b16 %v2609, %v2605
    %2866 = vmatprep.subr.bf16.mxu0 %v2611
    %2867 = vmatpush1.bf16.msra.mxu0 %v2610
    %2868 = vmatprep.subr.bf16.mxu0 %v2615
    %2869 = vmatpush1.bf16.msra.mxu0 %v2614
    %2870 = vmatprep.subr.bf16.mxu0 %v2619
    %2871 = vmatpush1.bf16.msra.mxu0 %v2618
    %2872 = vmatprep.subr.bf16.mxu0 %v2623
    %2873 = vmatpush1.bf16.msra.mxu0 %v2622
    %2874 = vmatprep.subr.bf16.mxu0 %v2627
    %2875 = vmatpush1.bf16.msra.mxu0 %v2626
    %2876 = vmatprep.subr.bf16.mxu0 %v2631
    %2877 = vmatpush1.bf16.msra.mxu0 %v2630
    %2878 = vmatprep.subr.bf16.mxu0 %v2635
    %2879 = vmatpush1.bf16.msra.mxu0 %v2634
    %2880 = vmatprep.subr.bf16.mxu0 %v2639
    %2881 = vmatpush1.bf16.msra.mxu0 %v2638
    %2882 = vmatprep.subr.bf16.mxu0 %v2643
    %2883 = vmatpush1.bf16.msra.mxu0 %v2642
    %2884 = vmatprep.subr.bf16.mxu0 %v2647
    %2885 = vmatpush1.bf16.msra.mxu0 %v2646
    %2886 = vmatprep.subr.bf16.mxu0 %v2651
    %2887 = vmatpush1.bf16.msra.mxu0 %v2650
    %2888 = vmatprep.subr.bf16.mxu0 %v2655
    %2889 = vmatpush1.bf16.msra.mxu0 %v2654
    %2890 = vmatprep.subr.bf16.mxu0 %v2659
    %2891 = vmatpush1.bf16.msra.mxu0 %v2658
    %2892 = vmatprep.subr.bf16.mxu0 %v2663
    %2893 = vmatpush1.bf16.msra.mxu0 %v2662
    %2894 = vmatprep.subr.bf16.mxu0 %v2667
    %2895 = vmatpush1.bf16.msra.mxu0 %v2666
    %2896 = vmatprep.subr.bf16.mxu0 %v2671
    %2897 = vmatpush1.bf16.msra.mxu0 %v2670
    %2898 = vmatprep.mubr.bf16.mxu0 %v2073
    %2899 = vmatmul.mubr.bf16.gmra.mrb[0].mxu0 %v2072
    %v2900 = vpop.f32.mrb[0].mxu0
    %v2901 = vadd.f32 %v2209, %v2900
    %v2902 = vpop.f32.mrb[0].mxu0
    %v2903 = vadd.f32 %v2213, %v2902
    %v2904 = vpop.f32.mrb[0].mxu0
    %v2905 = vpop.f32.mrb[0].mxu0
    %2906 = vdwg.mxu0
    %2907 = vmatprep.subr.bf16.mxu0 %v2675
    %2908 = vmatpush1.bf16.msra.mxu0 %v2674
    %2909 = vmatprep.subr.bf16.mxu0 %v2679
    %2910 = vmatpush1.bf16.msra.mxu0 %v2678
    %2911 = vmatprep.subr.bf16.mxu0 %v2683
    %2912 = vmatpush1.bf16.msra.mxu0 %v2682
    %2913 = vmatprep.subr.bf16.mxu0 %v2687
    %2914 = vmatpush1.bf16.msra.mxu0 %v2686
    %2915 = vmatprep.subr.bf16.mxu0 %v2691
    %2916 = vmatpush1.bf16.msra.mxu0 %v2690
    %2917 = vmatprep.subr.bf16.mxu0 %v2695
    %2918 = vmatpush1.bf16.msra.mxu0 %v2694
    %2919 = vmatprep.subr.bf16.mxu0 %v2699
    %2920 = vmatpush1.bf16.msra.mxu0 %v2698
    %2921 = vmatprep.subr.bf16.mxu0 %v2703
    %2922 = vmatpush1.bf16.msra.mxu0 %v2702
    %2923 = vmatprep.subr.bf16.mxu0 %v2707
    %2924 = vmatpush1.bf16.msra.mxu0 %v2706
    %2925 = vmatprep.subr.bf16.mxu0 %v2711
    %2926 = vmatpush1.bf16.msra.mxu0 %v2710
    %2927 = vmatprep.subr.bf16.mxu0 %v2715
    %2928 = vmatpush1.bf16.msra.mxu0 %v2714
    %2929 = vmatprep.subr.bf16.mxu0 %v2719
    %2930 = vmatpush1.bf16.msra.mxu0 %v2718
    %2931 = vmatprep.subr.bf16.mxu0 %v2723
    %2932 = vmatpush1.bf16.msra.mxu0 %v2722
    %2933 = vmatprep.subr.bf16.mxu0 %v2727
    %2934 = vmatpush1.bf16.msra.mxu0 %v2726
    %2935 = vmatprep.subr.bf16.mxu0 %v2731
    %2936 = vmatpush1.bf16.msra.mxu0 %v2730
    %2937 = vmatprep.subr.bf16.mxu0 %v2735
    %2938 = vmatpush1.bf16.msra.mxu0 %v2734
    %2939 = vmatprep.mubr.bf16.mxu0 %v2075
    %2940 = vmatmul.mubr.bf16.gmra.mrb[0].mxu0 %v2074
    %v2941 = vpop.f32.mrb[0].mxu0
    %v2942 = vadd.f32 %v2901, %v2941
    %v2943 = vpop.f32.mrb[0].mxu0
    %v2944 = vadd.f32 %v2903, %v2943
    %v2945 = vpop.f32.mrb[0].mxu0
    %v2946 = vpop.f32.mrb[0].mxu0
    %2947 = vdwg.mxu0
    %2948 = vmatprep.subr.bf16.mxu0 %v2613
    %2949 = vmatpush1.bf16.msra.mxu0 %v2612
    %2950 = vmatprep.subr.bf16.mxu0 %v2617
    %2951 = vmatpush1.bf16.msra.mxu0 %v2616
    %2952 = vmatprep.subr.bf16.mxu0 %v2621
    %2953 = vmatpush1.bf16.msra.mxu0 %v2620
    %2954 = vmatprep.subr.bf16.mxu0 %v2625
    %2955 = vmatpush1.bf16.msra.mxu0 %v2624
    %2956 = vmatprep.subr.bf16.mxu0 %v2629
    %2957 = vmatpush1.bf16.msra.mxu0 %v2628
    %2958 = vmatprep.subr.bf16.mxu0 %v2633
    %2959 = vmatpush1.bf16.msra.mxu0 %v2632
    %2960 = vmatprep.subr.bf16.mxu0 %v2637
    %2961 = vmatpush1.bf16.msra.mxu0 %v2636
    %2962 = vmatprep.subr.bf16.mxu0 %v2641
    %2963 = vmatpush1.bf16.msra.mxu0 %v2640
    %2964 = vmatprep.subr.bf16.mxu0 %v2645
    %2965 = vmatpush1.bf16.msra.mxu0 %v2644
    %2966 = vmatprep.subr.bf16.mxu0 %v2649
    %2967 = vmatpush1.bf16.msra.mxu0 %v2648
    %2968 = vmatprep.subr.bf16.mxu0 %v2653
    %2969 = vmatpush1.bf16.msra.mxu0 %v2652
    %2970 = vmatprep.subr.bf16.mxu0 %v2657
    %2971 = vmatpush1.bf16.msra.mxu0 %v2656
    %2972 = vmatprep.subr.bf16.mxu0 %v2661
    %2973 = vmatpush1.bf16.msra.mxu0 %v2660
    %2974 = vmatprep.subr.bf16.mxu0 %v2665
    %2975 = vmatpush1.bf16.msra.mxu0 %v2664
    %2976 = vmatprep.subr.bf16.mxu0 %v2669
    %2977 = vmatpush1.bf16.msra.mxu0 %v2668
    %2978 = vmatprep.subr.bf16.mxu0 %v2673
    %2979 = vmatpush1.bf16.msra.mxu0 %v2672
    %2980 = vmatprep.mubr.bf16.mxu0 %v2073
    %2981 = vmatmul.mubr.bf16.gmra.mrb[0].mxu0 %v2072
    %v2982 = vpop.f32.mrb[0].mxu0
    %v2983 = vadd.f32 %v2217, %v2982
    %v2984 = vpop.f32.mrb[0].mxu0
    %v2985 = vadd.f32 %v2221, %v2984
    %v2986 = vpop.f32.mrb[0].mxu0
    %v2987 = vpop.f32.mrb[0].mxu0
    %2988 = vdwg.mxu0
    %2989 = vmatprep.subr.bf16.mxu0 %v2677
    %2990 = vmatpush1.bf16.msra.mxu0 %v2676
    %2991 = vmatprep.subr.bf16.mxu0 %v2681
    %2992 = vmatpush1.bf16.msra.mxu0 %v2680
    %2993 = vmatprep.subr.bf16.mxu0 %v2685
    %2994 = vmatpush1.bf16.msra.mxu0 %v2684
    %2995 = vmatprep.subr.bf16.mxu0 %v2689
    %2996 = vmatpush1.bf16.msra.mxu0 %v2688
    %2997 = vmatprep.subr.bf16.mxu0 %v2693
    %2998 = vmatpush1.bf16.msra.mxu0 %v2692
    %2999 = vmatprep.subr.bf16.mxu0 %v2697
    %3000 = vmatpush1.bf16.msra.mxu0 %v2696
    %3001 = vmatprep.subr.bf16.mxu0 %v2701
    %3002 = vmatpush1.bf16.msra.mxu0 %v2700
    %3003 = vmatprep.subr.bf16.mxu0 %v2705
    %3004 = vmatpush1.bf16.msra.mxu0 %v2704
    %3005 = vmatprep.subr.bf16.mxu0 %v2709
    %3006 = vmatpush1.bf16.msra.mxu0 %v2708
    %3007 = vmatprep.subr.bf16.mxu0 %v2713
    %3008 = vmatpush1.bf16.msra.mxu0 %v2712
    %3009 = vmatprep.subr.bf16.mxu0 %v2717
    %3010 = vmatpush1.bf16.msra.mxu0 %v2716
    %3011 = vmatprep.subr.bf16.mxu0 %v2721
    %3012 = vmatpush1.bf16.msra.mxu0 %v2720
    %3013 = vmatprep.subr.bf16.mxu0 %v2725
    %3014 = vmatpush1.bf16.msra.mxu0 %v2724
    %3015 = vmatprep.subr.bf16.mxu0 %v2729
    %3016 = vmatpush1.bf16.msra.mxu0 %v2728
    %3017 = vmatprep.subr.bf16.mxu0 %v2733
    %3018 = vmatpush1.bf16.msra.mxu0 %v2732
    %3019 = vmatprep.subr.bf16.mxu0 %v2737
    %3020 = vmatpush1.bf16.msra.mxu0 %v2736
    %3021 = vmatprep.mubr.bf16.mxu0 %v2075
    %3022 = vmatmul.mubr.bf16.gmra.mrb[0].mxu0 %v2074
    %v3023 = vpop.f32.mrb[0].mxu0
    %v3024 = vadd.f32 %v2983, %v3023
    %v3025 = vpop.f32.mrb[0].mxu0
    %v3026 = vadd.f32 %v2985, %v3025
    %v3027 = vpop.f32.mrb[0].mxu0
    %v3028 = vpop.f32.mrb[0].mxu0
    %3029 = vdwg.mxu0
    %v3030 = vmax.f32 %v2942, 0.0
    %v3031 = vmax.f32 %v2944, 0.0
    %v3032 = vmax.f32 %v3024, 0.0
    %v3033 = vmax.f32 %v3026, 0.0
    %v3034 = vpack.c.bf16 %v3030, %v3030
    %v3035 = vpack.c.bf16 %v3031, %v3031
    %v3036 = vpack.c.bf16 %v3032, %v3032
    %v3037 = vpack.c.bf16 %v3033, %v3033
    %v3038 = vld [vmem:[#allocation14] sm:$0xf]
    %v3039 = vld [vmem:[#allocation14 + $0x4] sm:$0xf]
    %v3040 = vld [vmem:[#allocation14 + $0x8] sm:$0xf]
    %v3041 = vld [vmem:[#allocation14 + $0xc] sm:$0xf]
    %v3042 = vld [vmem:[#allocation14 + $0x10] sm:$0xf]
    %v3043 = vld [vmem:[#allocation14 + $0x14] sm:$0xf]
    %v3044 = vld [vmem:[#allocation14 + $0x18] sm:$0xf]
    %v3045 = vld [vmem:[#allocation14 + $0x1c] sm:$0xf]
    %v3046 = vld [vmem:[#allocation14 + $0x20] sm:$0xf]
    %v3047 = vld [vmem:[#allocation14 + $0x24] sm:$0xf]
    %v3048 = vld [vmem:[#allocation14 + $0x28] sm:$0xf]
    %v3049 = vld [vmem:[#allocation14 + $0x2c] sm:$0xf]
    %v3050 = vld [vmem:[#allocation14 + $0x30] sm:$0xf]
    %v3051 = vld [vmem:[#allocation14 + $0x34] sm:$0xf]
    %v3052 = vld [vmem:[#allocation14 + $0x38] sm:$0xf]
    %v3053 = vld [vmem:[#allocation14 + $0x3c] sm:$0xf]
    %v3054 = vld [vmem:[#allocation14 + $0x40] sm:$0xf]
    %v3055 = vld [vmem:[#allocation14 + $0x44] sm:$0xf]
    %v3056 = vld [vmem:[#allocation14 + $0x48] sm:$0xf]
    %v3057 = vld [vmem:[#allocation14 + $0x4c] sm:$0xf]
    %v3058 = vld [vmem:[#allocation14 + $0x50] sm:$0xf]
    %v3059 = vld [vmem:[#allocation14 + $0x54] sm:$0xf]
    %v3060 = vld [vmem:[#allocation14 + $0x58] sm:$0xf]
    %v3061 = vld [vmem:[#allocation14 + $0x5c] sm:$0xf]
    %v3062 = vld [vmem:[#allocation14 + $0x60] sm:$0xf]
    %v3063 = vld [vmem:[#allocation14 + $0x64] sm:$0xf]
    %v3064 = vld [vmem:[#allocation14 + $0x68] sm:$0xf]
    %v3065 = vld [vmem:[#allocation14 + $0x6c] sm:$0xf]
    %v3066 = vld [vmem:[#allocation14 + $0x70] sm:$0xf]
    %v3067 = vld [vmem:[#allocation14 + $0x74] sm:$0xf]
    %v3068 = vld [vmem:[#allocation14 + $0x78] sm:$0xf]
    %v3069 = vld [vmem:[#allocation14 + $0x7c] sm:$0xf]
    %v3070 = vld [vmem:[#allocation14 + $0x80] sm:$0xf]
    %v3071 = vld [vmem:[#allocation14 + $0x84] sm:$0xf]
    %v3072 = vld [vmem:[#allocation14 + $0x88] sm:$0xf]
    %v3073 = vld [vmem:[#allocation14 + $0x8c] sm:$0xf]
    %v3074 = vld [vmem:[#allocation14 + $0x90] sm:$0xf]
    %v3075 = vld [vmem:[#allocation14 + $0x94] sm:$0xf]
    %v3076 = vld [vmem:[#allocation14 + $0x98] sm:$0xf]
    %v3077 = vld [vmem:[#allocation14 + $0x9c] sm:$0xf]
    %v3078 = vld [vmem:[#allocation14 + $0xa0] sm:$0xf]
    %v3079 = vld [vmem:[#allocation14 + $0xa4] sm:$0xf]
    %v3080 = vld [vmem:[#allocation14 + $0xa8] sm:$0xf]
    %v3081 = vld [vmem:[#allocation14 + $0xac] sm:$0xf]
    %v3082 = vld [vmem:[#allocation14 + $0xb0] sm:$0xf]
    %v3083 = vld [vmem:[#allocation14 + $0xb4] sm:$0xf]
    %v3084 = vld [vmem:[#allocation14 + $0xb8] sm:$0xf]
    %v3085 = vld [vmem:[#allocation14 + $0xbc] sm:$0xf]
    %v3086 = vld [vmem:[#allocation14 + $0xc0] sm:$0xf]
    %v3087 = vld [vmem:[#allocation14 + $0xc4] sm:$0xf]
    %v3088 = vld [vmem:[#allocation14 + $0xc8] sm:$0xf]
    %v3089 = vld [vmem:[#allocation14 + $0xcc] sm:$0xf]
    %v3090 = vld [vmem:[#allocation14 + $0xd0] sm:$0xf]
    %v3091 = vld [vmem:[#allocation14 + $0xd4] sm:$0xf]
    %v3092 = vld [vmem:[#allocation14 + $0xd8] sm:$0xf]
    %v3093 = vld [vmem:[#allocation14 + $0xdc] sm:$0xf]
    %v3094 = vld [vmem:[#allocation14 + $0xe0] sm:$0xf]
    %v3095 = vld [vmem:[#allocation14 + $0xe4] sm:$0xf]
    %v3096 = vld [vmem:[#allocation14 + $0xe8] sm:$0xf]
    %v3097 = vld [vmem:[#allocation14 + $0xec] sm:$0xf]
    %v3098 = vld [vmem:[#allocation14 + $0xf0] sm:$0xf]
    %v3099 = vld [vmem:[#allocation14 + $0xf4] sm:$0xf]
    %v3100 = vld [vmem:[#allocation14 + $0xf8] sm:$0xf]
    %v3101 = vld [vmem:[#allocation14 + $0xfc] sm:$0xf]
    %v3102 = vld [vmem:[%s13] sm:$0x1]
    %v3104 = vlaneseq
    %v3105 = vshrl.u32 %v3104, 7
    %v3106 = vsub.s32 0, %v3105
    %v3107 = vrot.slane %v3102, %v3106
    %v3173 = vunpack.c.l.b16 %v3038
    %v3174 = vunpack.c.l.b16 %v3039
    %v3175 = vunpack.c.l.b16 %v3040
    %v3176 = vunpack.c.l.b16 %v3041
    %v3177 = vunpack.c.l.b16 %v3042
    %v3178 = vunpack.c.l.b16 %v3043
    %v3179 = vunpack.c.l.b16 %v3044
    %v3180 = vunpack.c.l.b16 %v3045
    %v3181 = vunpack.c.l.b16 %v3046
    %v3182 = vunpack.c.l.b16 %v3047
    %v3183 = vunpack.c.l.b16 %v3048
    %v3184 = vunpack.c.l.b16 %v3049
    %v3185 = vunpack.c.l.b16 %v3050
    %v3186 = vunpack.c.l.b16 %v3051
    %v3187 = vunpack.c.l.b16 %v3052
    %v3188 = vunpack.c.l.b16 %v3053
    %v3189 = vunpack.c.l.b16 %v3054
    %v3190 = vunpack.c.l.b16 %v3055
    %v3191 = vunpack.c.l.b16 %v3056
    %v3192 = vunpack.c.l.b16 %v3057
    %v3193 = vunpack.c.l.b16 %v3058
    %v3194 = vunpack.c.l.b16 %v3059
    %v3195 = vunpack.c.l.b16 %v3060
    %v3196 = vunpack.c.l.b16 %v3061
    %v3197 = vunpack.c.l.b16 %v3062
    %v3198 = vunpack.c.l.b16 %v3063
    %v3199 = vunpack.c.l.b16 %v3064
    %v3200 = vunpack.c.l.b16 %v3065
    %v3201 = vunpack.c.l.b16 %v3066
    %v3202 = vunpack.c.l.b16 %v3067
    %v3203 = vunpack.c.l.b16 %v3068
    %v3204 = vunpack.c.l.b16 %v3069
    %v3205 = vunpack.c.l.b16 %v3070
    %v3206 = vunpack.c.l.b16 %v3071
    %v3207 = vunpack.c.l.b16 %v3072
    %v3208 = vunpack.c.l.b16 %v3073
    %v3209 = vunpack.c.l.b16 %v3074
    %v3210 = vunpack.c.l.b16 %v3075
    %v3211 = vunpack.c.l.b16 %v3076
    %v3212 = vunpack.c.l.b16 %v3077
    %v3213 = vunpack.c.l.b16 %v3078
    %v3214 = vunpack.c.l.b16 %v3079
    %v3215 = vunpack.c.l.b16 %v3080
    %v3216 = vunpack.c.l.b16 %v3081
    %v3217 = vunpack.c.l.b16 %v3082
    %v3218 = vunpack.c.l.b16 %v3083
    %v3219 = vunpack.c.l.b16 %v3084
    %v3220 = vunpack.c.l.b16 %v3085
    %v3221 = vunpack.c.l.b16 %v3086
    %v3222 = vunpack.c.l.b16 %v3087
    %v3223 = vunpack.c.l.b16 %v3088
    %v3224 = vunpack.c.l.b16 %v3089
    %v3225 = vunpack.c.l.b16 %v3090
    %v3226 = vunpack.c.l.b16 %v3091
    %v3227 = vunpack.c.l.b16 %v3092
    %v3228 = vunpack.c.l.b16 %v3093
    %v3229 = vunpack.c.l.b16 %v3094
    %v3230 = vunpack.c.l.b16 %v3095
    %v3231 = vunpack.c.l.b16 %v3096
    %v3232 = vunpack.c.l.b16 %v3097
    %v3233 = vunpack.c.l.b16 %v3098
    %v3234 = vunpack.c.l.b16 %v3099
    %v3235 = vunpack.c.l.b16 %v3100
    %v3236 = vunpack.c.l.b16 %v3101
    %v3237 = vpack.c.b16 %v3174, %v3173
    %v3238 = vpack.c.b16 %v3176, %v3175
    %v3239 = vpack.c.b16 %v3178, %v3177
    %v3240 = vpack.c.b16 %v3180, %v3179
    %v3241 = vpack.c.b16 %v3182, %v3181
    %v3242 = vpack.c.b16 %v3184, %v3183
    %v3243 = vpack.c.b16 %v3186, %v3185
    %v3244 = vpack.c.b16 %v3188, %v3187
    %v3245 = vpack.c.b16 %v3190, %v3189
    %v3246 = vpack.c.b16 %v3192, %v3191
    %v3247 = vpack.c.b16 %v3194, %v3193
    %v3248 = vpack.c.b16 %v3196, %v3195
    %v3249 = vpack.c.b16 %v3198, %v3197
    %v3250 = vpack.c.b16 %v3200, %v3199
    %v3251 = vpack.c.b16 %v3202, %v3201
    %v3252 = vpack.c.b16 %v3204, %v3203
    %v3253 = vpack.c.b16 %v3206, %v3205
    %v3254 = vpack.c.b16 %v3208, %v3207
    %v3255 = vpack.c.b16 %v3210, %v3209
    %v3256 = vpack.c.b16 %v3212, %v3211
    %v3257 = vpack.c.b16 %v3214, %v3213
    %v3258 = vpack.c.b16 %v3216, %v3215
    %v3259 = vpack.c.b16 %v3218, %v3217
    %v3260 = vpack.c.b16 %v3220, %v3219
    %v3261 = vpack.c.b16 %v3222, %v3221
    %v3262 = vpack.c.b16 %v3224, %v3223
    %v3263 = vpack.c.b16 %v3226, %v3225
    %v3264 = vpack.c.b16 %v3228, %v3227
    %v3265 = vpack.c.b16 %v3230, %v3229
    %v3266 = vpack.c.b16 %v3232, %v3231
    %v3267 = vpack.c.b16 %v3234, %v3233
    %v3268 = vpack.c.b16 %v3236, %v3235
    %3301 = vmatprep.subr.bf16.mxu0 0
    %3302 = vmatpush1.bf16.msra.mxu0 %v3237
    %3303 = vmatprep.subr.bf16.mxu0 0
    %3304 = vmatpush1.bf16.msra.mxu0 %v3238
    %3305 = vmatprep.subr.bf16.mxu0 0
    %3306 = vmatpush1.bf16.msra.mxu0 %v3239
    %3307 = vmatprep.subr.bf16.mxu0 0
    %3308 = vmatpush1.bf16.msra.mxu0 %v3240
    %3309 = vmatprep.subr.bf16.mxu0 0
    %3310 = vmatpush1.bf16.msra.mxu0 %v3241
    %3311 = vmatprep.subr.bf16.mxu0 0
    %3312 = vmatpush1.bf16.msra.mxu0 %v3242
    %3313 = vmatprep.subr.bf16.mxu0 0
    %3314 = vmatpush1.bf16.msra.mxu0 %v3243
    %3315 = vmatprep.subr.bf16.mxu0 0
    %3316 = vmatpush1.bf16.msra.mxu0 %v3244
    %3317 = vmatprep.subr.bf16.mxu0 0
    %3318 = vmatpush1.bf16.msra.mxu0 %v3245
    %3319 = vmatprep.subr.bf16.mxu0 0
    %3320 = vmatpush1.bf16.msra.mxu0 %v3246
    %3321 = vmatprep.subr.bf16.mxu0 0
    %3322 = vmatpush1.bf16.msra.mxu0 %v3247
    %3323 = vmatprep.subr.bf16.mxu0 0
    %3324 = vmatpush1.bf16.msra.mxu0 %v3248
    %3325 = vmatprep.subr.bf16.mxu0 0
    %3326 = vmatpush1.bf16.msra.mxu0 %v3249
    %3327 = vmatprep.subr.bf16.mxu0 0
    %3328 = vmatpush1.bf16.msra.mxu0 %v3250
    %3329 = vmatprep.subr.bf16.mxu0 0
    %3330 = vmatpush1.bf16.msra.mxu0 %v3251
    %3331 = vmatprep.subr.bf16.mxu0 0
    %3332 = vmatpush1.bf16.msra.mxu0 %v3252
    %3333 = vmatprep.mubr.bf16.mxu0 %v3035
    %3334 = vmatmul.mubr.bf16.gmra.mrb[0].mxu0 %v3034
    %v3335 = vpop.f32.mrb[0].mxu0
    %v3336 = vadd.f32 %v3107, %v3335
    %v3337 = vpop.f32.mrb[0].mxu0
    %v3338 = vpop.f32.mrb[0].mxu0
    %v3339 = vpop.f32.mrb[0].mxu0
    %3340 = vdwg.mxu0
    %3341 = vmatprep.subr.bf16.mxu0 0
    %3342 = vmatpush1.bf16.msra.mxu0 %v3253
    %3343 = vmatprep.subr.bf16.mxu0 0
    %3344 = vmatpush1.bf16.msra.mxu0 %v3254
    %3345 = vmatprep.subr.bf16.mxu0 0
    %3346 = vmatpush1.bf16.msra.mxu0 %v3255
    %3347 = vmatprep.subr.bf16.mxu0 0
    %3348 = vmatpush1.bf16.msra.mxu0 %v3256
    %3349 = vmatprep.subr.bf16.mxu0 0
    %3350 = vmatpush1.bf16.msra.mxu0 %v3257
    %3351 = vmatprep.subr.bf16.mxu0 0
    %3352 = vmatpush1.bf16.msra.mxu0 %v3258
    %3353 = vmatprep.subr.bf16.mxu0 0
    %3354 = vmatpush1.bf16.msra.mxu0 %v3259
    %3355 = vmatprep.subr.bf16.mxu0 0
    %3356 = vmatpush1.bf16.msra.mxu0 %v3260
    %3357 = vmatprep.subr.bf16.mxu0 0
    %3358 = vmatpush1.bf16.msra.mxu0 %v3261
    %3359 = vmatprep.subr.bf16.mxu0 0
    %3360 = vmatpush1.bf16.msra.mxu0 %v3262
    %3361 = vmatprep.subr.bf16.mxu0 0
    %3362 = vmatpush1.bf16.msra.mxu0 %v3263
    %3363 = vmatprep.subr.bf16.mxu0 0
    %3364 = vmatpush1.bf16.msra.mxu0 %v3264
    %3365 = vmatprep.subr.bf16.mxu0 0
    %3366 = vmatpush1.bf16.msra.mxu0 %v3265
    %3367 = vmatprep.subr.bf16.mxu0 0
    %3368 = vmatpush1.bf16.msra.mxu0 %v3266
    %3369 = vmatprep.subr.bf16.mxu0 0
    %3370 = vmatpush1.bf16.msra.mxu0 %v3267
    %3371 = vmatprep.subr.bf16.mxu0 0
    %3372 = vmatpush1.bf16.msra.mxu0 %v3268
    %3373 = vmatprep.mubr.bf16.mxu0 %v3037
    %3374 = vmatmul.mubr.bf16.gmra.mrb[0].mxu0 %v3036
    %v3375 = vpop.f32.mrb[0].mxu0
    %v3376 = vadd.f32 %v3336, %v3375
    %v3377 = vpop.f32.mrb[0].mxu0
    %v3378 = vpop.f32.mrb[0].mxu0
    %v3379 = vpop.f32.mrb[0].mxu0
    %3380 = vdwg.mxu0
    %3381 = vst [vmem:[#allocation16] sm:$0xff] %v3376
    // Predicated region
    $region90: #{tpu_custom_call.1} parent=1 // pred_check
      _
    $region91: #{tpu_custom_call.1} parent=1 // pred_check_branch
      %3383 = sbr.rel (0) target = $region93
    $region92: #{tpu_custom_call.1} parent=1 // pred_region
      %s3385 = ssub.s32 128, 128
      %3386 = vsyncadd [#allocation4], %s3385
      %s3388 = sshll.u32 [#allocation16], 4
      %s3389 = int_to_ptr.vmem [resolvable:$true] %s3388
      %3391 = dma.vmem_to_hbm [thread:$0]  %s3389, 128, %s14, [#allocation4]
    $region93: #{tpu_custom_call.1} parent=1 // pred_fallthru
      _
    // Predicated region
    $region94: #{tpu_custom_call.1} parent=1 // pred_check
      _
    $region95: #{tpu_custom_call.1} parent=1 // pred_check_branch
      %3393 = sbr.rel (0) target = $region97
    $region96: #{tpu_custom_call.1} parent=1 // pred_region
      %s3395 = ssub.s32 128, 128
      %3396 = vsyncadd [#allocation18], %s3395
      %s3398 = sshll.u32 [#allocation17], 4
      %s3399 = int_to_ptr.vmem [resolvable:$true] %s3398
      %3401 = dma.vmem_to_hbm [thread:$0]  %s3399, 128, %s15, [#allocation18]
    $region97: #{tpu_custom_call.1} parent=1 // pred_fallthru
      _
    // Predicated region
    $region98: #{tpu_custom_call.1} parent=1 // pred_check
      _
    $region99: #{tpu_custom_call.1} parent=1 // pred_check_branch
      %3403 = sbr.rel (0) target = $region101
    $region100: #{tpu_custom_call.1} parent=1 // pred_region
      %3404 = dma.done [#allocation4], 128
    $region101: #{tpu_custom_call.1} parent=1 // pred_fallthru
      _
    // Predicated region
    $region102: #{tpu_custom_call.1} parent=1 // pred_check
      _
    $region103: #{tpu_custom_call.1} parent=1 // pred_check_branch
      %3406 = sbr.rel (0) target = $region105
    $region104: #{tpu_custom_call.1} parent=1 // pred_region
      %3407 = dma.done [#allocation18], 128
    $region105: #{tpu_custom_call.1} parent=1 // pred_fallthru
      _
    %3408 = vsyncpa [#allocation3], 1
    %3409 = vsyncpa [#allocation6], 1
    %3410 = vsyncpa [#allocation9], 1
    %3411 = vsyncpa [#allocation12], 1
    %3412 = vsyncpa [#allocation15], 1
    %3413 = vsyncpa [#allocation4], 1
    %3414 = vsyncpa [#allocation18], 1

</llo_original>
